<compile_context>
chip_gen: v5e
topology: v5e:2x2
jax: 0.10.0
libtpu: 0.0.40
codegen_flags: <defaults>
</compile_context>

<pallas_src>
from functools import partial

import jax
import jax.numpy as jnp
from jax.experimental import pallas as pl
from jax.experimental.pallas import tpu as pltpu


_SQRT_HALF = 0.7071067811865476


def _erf_approx(x):
    """Abramowitz & Stegun 7.1.26 erf approximation (f32, |err| <= 1.5e-7).

    Only uses +, *, /, exp, where -> guaranteed Mosaic lowering.
    """
    pc = 0.3275911
    a1, a2, a3, a4, a5 = (0.254829592, -0.284496736, 1.421413741,
                          -1.453152027, 1.061405429)
    ax = jnp.abs(x)
    t = 1.0 / (1.0 + pc * ax)
    poly = ((((a5 * t + a4) * t + a3) * t + a2) * t + a1) * t
    y = 1.0 - poly * jnp.exp(-ax * ax)
    return jnp.where(x >= 0, y, -y)


def _gelu_exact(x):
    """Exact-erf GELU (matches PyTorch nn.GELU default)."""
    return 0.5 * x * (1.0 + _erf_approx(x * _SQRT_HALF))


# ----------------------------- fused stem Pallas kernel ----------------------------- #
# Index conventions
#   The wrapper applies a stride-4 space-to-depth to the conv-padded input:
#       x4[n, I, J, (dy*4+dx)*Cin + c] = x_pad[n, 4I+dy, 4J+dx, c],   dy,dx in 0..3,
#   (x_pad has 1 zero row/col top/left and 3 bottom/right).  A final output pixel (i, j)
#   of the stride-4 stem depends only on the 2x2 window x4[i:i+2, j:j+2], so every access
#   in the kernel is stride-1:
#     * stage 1: one (H2*W2, 4*16*Cin) "super patch" + 4 phase matmuls produce the four
#       stage-1 phase planes y1[2i+p, 2j+q]  (BN1 scale folded into the weights),
#     * the stage-2 3x3/stride-2 conv only needs those phase planes shifted by 0/-1
#       group rows/cols, so its im2col patch (H2*W2, 9*hidden) is assembled in VMEM
#       scratch with plain offset stores (top/left halo rows stay zero) and consumed by
#       ONE matmul + BN2 bias + SiLU.  y1 never touches HBM.


def _stem_kernel(x_ref, w1_ref, b1_ref, w2_ref, b2_ref, o_ref, p1_ref, p2_ref,
                 *, H2, W2, C16, hidden):
    # kh/kw -> (source phase, group-row/col shift) for the stage-2 3x3 stencil.
    _PHASE_SHIFT = ((1, -1), (0, 0), (1, 0))

    # ---- assemble the stage-1 super patch (every element overwritten -> no zeroing).
    for ai in (0, 1):
        for aj in (0, 1):
            cb = (ai * 2 + aj) * C16
            for i in range(H2):
                p1_ref[i * W2:(i + 1) * W2, cb:cb + C16] = x_ref[i + ai, aj:aj + W2, :]
    patch1 = p1_ref[...]

    # Stage-2 patch: zero first so the halo (top/left padding of y1) positions stay zero.
    p2_ref[...] = jnp.zeros_like(p2_ref)

    b1v = b1_ref[...]
    # ---- stage 1: one MXU matmul per output phase, BN1 bias + exact GELU, scattered
    #      straight into the stage-2 patch.
    for p in (0, 1):
        for q in (0, 1):
            acc = jnp.dot(patch1, w1_ref[p * 2 + q],
                          preferred_element_type=jnp.float32)
            y1 = _gelu_exact(acc + b1v).astype(jnp.bfloat16)       # (H2*W2, hidden)
            for kh in range(3):
                ph, di = _PHASE_SHIFT[kh]
                if ph != p:
                    continue
                for kw in range(3):
                    qh, dj = _PHASE_SHIFT[kw]
                    if qh != q:
                        continue
                    cb = (kh * 3 + kw) * hidden
                    for i in range(H2):
                        si = i + di
                        if si < 0:
                            continue                    # top halo row stays zero
                        if dj == 0:
                            p2_ref[i * W2:(i + 1) * W2, cb:cb + hidden] = (
                                y1[si * W2:(si + 1) * W2, :])
                        elif W2 > 1:                    # dj == -1: left halo col stays 0
                            p2_ref[i * W2 + 1:(i + 1) * W2, cb:cb + hidden] = (
                                y1[si * W2:si * W2 + W2 - 1, :])

    # ---- stage 2: single MXU matmul + BN2 bias + SiLU (f32 epilogue).
    acc2 = jnp.dot(p2_ref[...], w2_ref[...], preferred_element_type=jnp.float32)
    acc2 = acc2 + b2_ref[...]
    o_ref[...] = (acc2 * jax.nn.sigmoid(acc2)).astype(o_ref.dtype)


# ----------------------------------- JAX glue ---------------------------------------- #
def fold_bn(gamma, beta, mean, var, eps=1e-5):
    scale = gamma.astype(jnp.float32) / jnp.sqrt(var.astype(jnp.float32) + eps)
    bias = beta.astype(jnp.float32) - mean.astype(jnp.float32) * scale
    return scale, bias


def _space_to_depth4(x_nhwc):
    """Stride-4 space-to-depth of the conv-padded input (1 zero top/left, 3 bottom/right)."""
    N, H, W, C = x_nhwc.shape
    Hb, Wb = H // 4 + 1, W // 4 + 1
    xp = jnp.pad(x_nhwc, ((0, 0), (1, 3), (1, 3), (0, 0)))
    xp = xp.reshape(N, Hb, 4, Wb, 4, C).transpose(0, 1, 3, 2, 4, 5)
    return xp.reshape(N, Hb, Wb, 16 * C)


def _build_stage1_weights(w1, scale1, cin, hidden):
    """Scatter the (3,3,cin,hidden) conv1 weights (BN1 scale folded, f32) into the four
    per-phase (4*16*cin, hidden) super-patch weight matrices used by the kernel."""
    w = w1.reshape(3, 3, cin, hidden).astype(jnp.float32) * scale1[None, None, None, :]
    c16 = 16 * cin
    w1p = jnp.zeros((4, 4 * c16, hidden), jnp.float32)
    for p in (0, 1):
        for q in (0, 1):
            for r in range(3):
                ai, dy = divmod(2 * p + r, 4)
                for s in range(3):
                    aj, dx = divmod(2 * q + s, 4)
                    col = (ai * 2 + aj) * c16 + (dy * 4 + dx) * cin
                    w1p = w1p.at[p * 2 + q, col:col + cin, :].set(w[r, s])
    return w1p


def _fused_stem_call(x4, w1p, b1, w2p, b2, *, H2, W2, Cin, hidden, embed):
    N = x4.shape[0]
    C16 = 16 * Cin
    M2 = H2 * W2

    kernel = partial(_stem_kernel, H2=H2, W2=W2, C16=C16, hidden=hidden)

    flops = 2 * N * M2 * (4 * (4 * C16) * hidden + (9 * hidden) * embed)
    transcendentals = N * M2 * (4 * hidden + embed)
    bytes_accessed = (x4.size * 2 + w1p.size * 2 + w2p.size * 2
                      + (b1.size + b2.size) * 4 + N * M2 * embed * 4)

    # Explicit VMEM budget: double-buffered input/output blocks + resident weights + the
    # two patch scratch buffers + slack for f32 intermediates.  Capped at 64 MiB so the
    # same config also fits v7x (64 MiB physical per TensorCore).
    x_blk = (H2 + 1) * (W2 + 1) * C16 * 2
    o_blk = M2 * embed * 4
    scratch = M2 * (4 * C16 + 9 * hidden) * 2
    interm = 8 * M2 * max(hidden, embed) * 4
    est = 2 * x_blk + 2 * o_blk + w1p.size * 2 + w2p.size * 2 + scratch + interm
    vmem_limit = int(min(max(4 * est, 32 * 2 ** 20), 64 * 2 ** 20))

    return pl.pallas_call(
        kernel,
        out_shape=jax.ShapeDtypeStruct((N, M2, embed), jnp.float32),
        grid=(N,),
        in_specs=[
            # One image's space-to-depth block per grid step (batch dim squeezed).
            pl.BlockSpec((None, H2 + 1, W2 + 1, C16), lambda n: (n, 0, 0, 0)),
            # Grid-invariant weights/biases (constant index_map, resident in VMEM).
            # TODO(synk): mark these pl.Buffered(1) to halve their VMEM footprint once
            # single-buffering is needed (they are tiny at stem sizes).
            pl.BlockSpec(w1p.shape, lambda n: (0, 0, 0)),
            pl.BlockSpec(b1.shape, lambda n: (0, 0)),
            pl.BlockSpec(w2p.shape, lambda n: (0, 0)),
            pl.BlockSpec(b2.shape, lambda n: (0, 0)),
        ],
        out_specs=pl.BlockSpec((None, M2, embed), lambda n: (n, 0, 0)),
        scratch_shapes=[
            pltpu.VMEM((M2, 4 * C16), jnp.bfloat16),      # stage-1 super patch
            pltpu.VMEM((M2, 9 * hidden), jnp.bfloat16),   # stage-2 im2col patch
        ],
        compiler_params=pltpu.CompilerParams(
            dimension_semantics=("parallel",),            # batch steps shard v7x TCs
            vmem_limit_bytes=vmem_limit,
        ),
        cost_estimate=pl.CostEstimate(flops=flops, transcendentals=transcendentals,
                                      bytes_accessed=bytes_accessed),
    )(x4, w1p, b1, w2p, b2)


def simple_stem_forward(x_nchw, params):
    """SimpleStem forward.  x_nchw: (N, Cin, H, W) -> (N, embed, H//4, W//4)."""
    N, Cin, H, W = x_nchw.shape
    assert H % 4 == 0 and W % 4 == 0, "fused stem kernel requires H, W divisible by 4"
    hidden = params["w1"].shape[1]
    embed = params["w2"].shape[1]
    H2, W2 = H // 4, W // 4

    # NHWC + bf16, then the cheap stride-4 space-to-depth (the only wrapper pass over x).
    x = jnp.transpose(x_nchw, (0, 2, 3, 1)).astype(jnp.bfloat16)
    x4 = _space_to_depth4(x)

    s1, b1 = fold_bn(params["bn1_gamma"], params["bn1_beta"],
                     params["bn1_mean"], params["bn1_var"])
    s2, b2 = fold_bn(params["bn2_gamma"], params["bn2_beta"],
                     params["bn2_mean"], params["bn2_var"])

    w1p = _build_stage1_weights(params["w1"], s1, Cin, hidden).astype(jnp.bfloat16)
    w2p = (params["w2"].astype(jnp.float32) * s2[None, :]).astype(jnp.bfloat16)
    b1 = b1.reshape(1, hidden)
    b2 = b2.reshape(1, embed)

    out = _fused_stem_call(x4, w1p, b1, w2p, b2,
                           H2=H2, W2=W2, Cin=Cin, hidden=hidden, embed=embed)
    # Final output kept f32 to match the PyTorch module's dtype (review note #11 declined).
    out = out.reshape(N, H2, W2, embed)
    return jnp.transpose(out, (0, 3, 1, 2))  # -> NCHW


# ------------------------------ pure-JAX reference ------------------------------------ #
def _reference_forward(x_nchw, params, ks=3):
    pad = ks // 2

    def conv_bn_act(x, w_hwio, gamma, beta, mean, var, act):
        y = jax.lax.conv_general_dilated(
            x, w_hwio, window_strides=(2, 2), padding=[(pad, pad), (pad, pad)],
            dimension_numbers=("NHWC", "HWIO", "NHWC"))
        y = (y - mean) / jnp.sqrt(var + 1e-5) * gamma + beta
        if act == "gelu":
            return jax.nn.gelu(y, approximate=False)   # PyTorch nn.GELU default (erf)
        return y * jax.nn.sigmoid(y)

    x = jnp.transpose(x_nchw, (0, 2, 3, 1))
    cin = x.shape[-1]
    hidden = params["w1"].shape[1]
    embed = params["w2"].shape[1]
    w1 = params["w1"].reshape(ks, ks, cin, hidden)
    w2 = params["w2"].reshape(ks, ks, hidden, embed)
    y = conv_bn_act(x, w1, params["bn1_gamma"], params["bn1_beta"],
                    params["bn1_mean"], params["bn1_var"], "gelu")
    y = conv_bn_act(y, w2, params["bn2_gamma"], params["bn2_beta"],
                    params["bn2_mean"], params["bn2_var"], "silu")
    return jnp.transpose(y, (0, 3, 1, 2))


# ------------------------------------- main -------------------------------------------- #
def init_params(key, inp, embed_dim, ks=3):
    hidden = embed_dim // 2
    keys = jax.random.split(key, 10)
    # Conv weights stored directly in im2col order (kh, kw, cin) x cout,
    # equivalent to PyTorch OIHW weights permuted (2, 3, 1, 0) then flattened.
    w1 = jax.random.normal(keys[0], (ks * ks * inp, hidden), jnp.float32) * 0.1
    w2 = jax.random.normal(keys[1], (ks * ks * hidden, embed_dim), jnp.float32) * 0.1
    return {
        "w1": w1,
        "w2": w2,
        "bn1_gamma": jax.random.uniform(keys[2], (hidden,), jnp.float32, 0.5, 1.5),
        "bn1_beta": jax.random.normal(keys[3], (hidden,), jnp.float32) * 0.1,
        "bn1_mean": jax.random.normal(keys[4], (hidden,), jnp.float32) * 0.1,
        "bn1_var": jax.random.uniform(keys[5], (hidden,), jnp.float32, 0.5, 1.5),
        "bn2_gamma": jax.random.uniform(keys[6], (embed_dim,), jnp.float32, 0.5, 1.5),
        "bn2_beta": jax.random.normal(keys[7], (embed_dim,), jnp.float32) * 0.1,
        "bn2_mean": jax.random.normal(keys[8], (embed_dim,), jnp.float32) * 0.1,
        "bn2_var": jax.random.uniform(keys[9], (embed_dim,), jnp.float32, 0.5, 1.5),
    }


if __name__ == "__main__":
    key = jax.random.PRNGKey(0)
    k_x, k_p = jax.random.split(key)

    N, Cin, H, W = 2, 4, 16, 16
    embed_dim = 32

    x = jax.random.normal(k_x, (N, Cin, H, W), jnp.float32)
    params = init_params(k_p, Cin, embed_dim, ks=3)

    fwd = jax.jit(simple_stem_forward)
    out = jax.block_until_ready(fwd(x, params))
    assert out.shape == (N, embed_dim, H // 4, W // 4), out.shape

    ref = jax.block_until_ready(_reference_forward(x, params, ks=3))
    # bf16 inputs/weights (f32 accumulation) vs f32 reference -> loose-ish tolerance.
    max_err = float(jnp.max(jnp.abs(out - ref)))
    assert jnp.allclose(out, ref, rtol=5e-2, atol=5e-2), f"max_err={max_err}"

    print("KERNEL_OK")
</pallas_src>

<mosaic_0001>
module attributes {stable_mosaic.version = 11 : i64} {
  func.func @_stem_kernel(%arg0: i32, %arg1: memref<1x5x5x64xbf16, #tpu.memory_space<vmem>>, %arg2: memref<4x256x16xbf16, #tpu.memory_space<vmem>>, %arg3: memref<1x16xf32, #tpu.memory_space<vmem>>, %arg4: memref<144x32xbf16, #tpu.memory_space<vmem>>, %arg5: memref<1x32xf32, #tpu.memory_space<vmem>>, %arg6: memref<1x16x32xf32, #tpu.memory_space<vmem>>, %arg7: memref<16x256xbf16, #tpu.memory_space<vmem>>, %arg8: memref<16x144xbf16, #tpu.memory_space<vmem>>) attributes {dimension_semantics = [#tpu.dimension_semantics<parallel>], iteration_bounds = array<i64: 2>, scalar_prefetch = 0 : i64, scratch_operands = 2 : i64, tpu.core_type = #tpu.core_type<tc>, window_params = [{transform_indices = @transform_0, window_bounds = array<i64: 1, 5, 5, 64>}, {pipeline_mode = #tpu.pipeline_mode<synchronous>, transform_indices = @transform_1, window_bounds = array<i64: 4, 256, 16>}, {pipeline_mode = #tpu.pipeline_mode<synchronous>, transform_indices = @transform_2, window_bounds = array<i64: 1, 16>}, {pipeline_mode = #tpu.pipeline_mode<synchronous>, transform_indices = @transform_3, window_bounds = array<i64: 144, 32>}, {pipeline_mode = #tpu.pipeline_mode<synchronous>, transform_indices = @transform_4, window_bounds = array<i64: 1, 32>}, {transform_indices = @transform_5, window_bounds = array<i64: 1, 16, 32>}]} {
    %c0 = arith.constant 0 : index
    %c0_0 = arith.constant 0 : index
    %c0_1 = arith.constant 0 : index
    %c0_2 = arith.constant 0 : index
    %0 = vector.load %arg1[%c0, %c0_0, %c0_1, %c0_2] : memref<1x5x5x64xbf16, #tpu.memory_space<vmem>>, vector<1x1x4x64xbf16>
    %1 = vector.shape_cast %0 : vector<1x1x4x64xbf16> to vector<4x64xbf16>
    %c0_3 = arith.constant 0 : index
    %c0_4 = arith.constant 0 : index
    %2 = vector.load %arg7[%c0_3, %c0_4] : memref<16x256xbf16, #tpu.memory_space<vmem>>, vector<4x64xbf16>
    tpu.vector_store %arg7[%c0_3, %c0_4], %1 {strides = array<i32>} : memref<16x256xbf16, #tpu.memory_space<vmem>>, vector<4x64xbf16>,
    %c0_5 = arith.constant 0 : index
    %c1 = arith.constant 1 : index
    %c0_6 = arith.constant 0 : index
    %c0_7 = arith.constant 0 : index
    %3 = vector.load %arg1[%c0_5, %c1, %c0_6, %c0_7] : memref<1x5x5x64xbf16, #tpu.memory_space<vmem>>, vector<1x1x4x64xbf16>
    %4 = vector.shape_cast %3 : vector<1x1x4x64xbf16> to vector<4x64xbf16>
    %c4 = arith.constant 4 : index
    %c0_8 = arith.constant 0 : index
    %5 = vector.load %arg7[%c4, %c0_8] : memref<16x256xbf16, #tpu.memory_space<vmem>>, vector<4x64xbf16>
    tpu.vector_store %arg7[%c4, %c0_8], %4 {strides = array<i32>} : memref<16x256xbf16, #tpu.memory_space<vmem>>, vector<4x64xbf16>,
    %c0_9 = arith.constant 0 : index
    %c2 = arith.constant 2 : index
    %c0_10 = arith.constant 0 : index
    %c0_11 = arith.constant 0 : index
    %6 = vector.load %arg1[%c0_9, %c2, %c0_10, %c0_11] : memref<1x5x5x64xbf16, #tpu.memory_space<vmem>>, vector<1x1x4x64xbf16>
    %7 = vector.shape_cast %6 : vector<1x1x4x64xbf16> to vector<4x64xbf16>
    %c8 = arith.constant 8 : index
    %c0_12 = arith.constant 0 : index
    %8 = vector.load %arg7[%c8, %c0_12] : memref<16x256xbf16, #tpu.memory_space<vmem>>, vector<4x64xbf16>
    tpu.vector_store %arg7[%c8, %c0_12], %7 {strides = array<i32>} : memref<16x256xbf16, #tpu.memory_space<vmem>>, vector<4x64xbf16>,
    %c0_13 = arith.constant 0 : index
    %c3 = arith.constant 3 : index
    %c0_14 = arith.constant 0 : index
    %c0_15 = arith.constant 0 : index
    %9 = vector.load %arg1[%c0_13, %c3, %c0_14, %c0_15] : memref<1x5x5x64xbf16, #tpu.memory_space<vmem>>, vector<1x1x4x64xbf16>
    %10 = vector.shape_cast %9 : vector<1x1x4x64xbf16> to vector<4x64xbf16>
    %c12 = arith.constant 12 : index
    %c0_16 = arith.constant 0 : index
    %11 = vector.load %arg7[%c12, %c0_16] : memref<16x256xbf16, #tpu.memory_space<vmem>>, vector<4x64xbf16>
    tpu.vector_store %arg7[%c12, %c0_16], %10 {strides = array<i32>} : memref<16x256xbf16, #tpu.memory_space<vmem>>, vector<4x64xbf16>,
    %c0_17 = arith.constant 0 : index
    %c0_18 = arith.constant 0 : index
    %c1_19 = arith.constant 1 : index
    %c0_20 = arith.constant 0 : index
    %12 = vector.load %arg1[%c0_17, %c0_18, %c1_19, %c0_20] : memref<1x5x5x64xbf16, #tpu.memory_space<vmem>>, vector<1x1x4x64xbf16>
    %13 = vector.shape_cast %12 : vector<1x1x4x64xbf16> to vector<4x64xbf16>
    %c0_21 = arith.constant 0 : index
    %c64 = arith.constant 64 : index
    %14 = vector.load %arg7[%c0_21, %c64] : memref<16x256xbf16, #tpu.memory_space<vmem>>, vector<4x64xbf16>
    tpu.vector_store %arg7[%c0_21, %c64], %13 {strides = array<i32>} : memref<16x256xbf16, #tpu.memory_space<vmem>>, vector<4x64xbf16>,
    %c0_22 = arith.constant 0 : index
    %c1_23 = arith.constant 1 : index
    %c1_24 = arith.constant 1 : index
    %c0_25 = arith.constant 0 : index
    %15 = vector.load %arg1[%c0_22, %c1_23, %c1_24, %c0_25] : memref<1x5x5x64xbf16, #tpu.memory_space<vmem>>, vector<1x1x4x64xbf16>
    %16 = vector.shape_cast %15 : vector<1x1x4x64xbf16> to vector<4x64xbf16>
    %c4_26 = arith.constant 4 : index
    %c64_27 = arith.constant 64 : index
    %17 = vector.load %arg7[%c4_26, %c64_27] : memref<16x256xbf16, #tpu.memory_space<vmem>>, vector<4x64xbf16>
    tpu.vector_store %arg7[%c4_26, %c64_27], %16 {strides = array<i32>} : memref<16x256xbf16, #tpu.memory_space<vmem>>, vector<4x64xbf16>,
    %c0_28 = arith.constant 0 : index
    %c2_29 = arith.constant 2 : index
    %c1_30 = arith.constant 1 : index
    %c0_31 = arith.constant 0 : index
    %18 = vector.load %arg1[%c0_28, %c2_29, %c1_30, %c0_31] : memref<1x5x5x64xbf16, #tpu.memory_space<vmem>>, vector<1x1x4x64xbf16>
    %19 = vector.shape_cast %18 : vector<1x1x4x64xbf16> to vector<4x64xbf16>
    %c8_32 = arith.constant 8 : index
    %c64_33 = arith.constant 64 : index
    %20 = vector.load %arg7[%c8_32, %c64_33] : memref<16x256xbf16, #tpu.memory_space<vmem>>, vector<4x64xbf16>
    tpu.vector_store %arg7[%c8_32, %c64_33], %19 {strides = array<i32>} : memref<16x256xbf16, #tpu.memory_space<vmem>>, vector<4x64xbf16>,
    %c0_34 = arith.constant 0 : index
    %c3_35 = arith.constant 3 : index
    %c1_36 = arith.constant 1 : index
    %c0_37 = arith.constant 0 : index
    %21 = vector.load %arg1[%c0_34, %c3_35, %c1_36, %c0_37] : memref<1x5x5x64xbf16, #tpu.memory_space<vmem>>, vector<1x1x4x64xbf16>
    %22 = vector.shape_cast %21 : vector<1x1x4x64xbf16> to vector<4x64xbf16>
    %c12_38 = arith.constant 12 : index
    %c64_39 = arith.constant 64 : index
    %23 = vector.load %arg7[%c12_38, %c64_39] : memref<16x256xbf16, #tpu.memory_space<vmem>>, vector<4x64xbf16>
    tpu.vector_store %arg7[%c12_38, %c64_39], %22 {strides = array<i32>} : memref<16x256xbf16, #tpu.memory_space<vmem>>, vector<4x64xbf16>,
    %c0_40 = arith.constant 0 : index
    %c1_41 = arith.constant 1 : index
    %c0_42 = arith.constant 0 : index
    %c0_43 = arith.constant 0 : index
    %24 = vector.load %arg1[%c0_40, %c1_41, %c0_42, %c0_43] : memref<1x5x5x64xbf16, #tpu.memory_space<vmem>>, vector<1x1x4x64xbf16>
    %25 = vector.shape_cast %24 : vector<1x1x4x64xbf16> to vector<4x64xbf16>
    %c0_44 = arith.constant 0 : index
    %c128 = arith.constant 128 : index
    %26 = vector.load %arg7[%c0_44, %c128] : memref<16x256xbf16, #tpu.memory_space<vmem>>, vector<4x64xbf16>
    tpu.vector_store %arg7[%c0_44, %c128], %25 {strides = array<i32>} : memref<16x256xbf16, #tpu.memory_space<vmem>>, vector<4x64xbf16>,
    %c0_45 = arith.constant 0 : index
    %c2_46 = arith.constant 2 : index
    %c0_47 = arith.constant 0 : index
    %c0_48 = arith.constant 0 : index
    %27 = vector.load %arg1[%c0_45, %c2_46, %c0_47, %c0_48] : memref<1x5x5x64xbf16, #tpu.memory_space<vmem>>, vector<1x1x4x64xbf16>
    %28 = vector.shape_cast %27 : vector<1x1x4x64xbf16> to vector<4x64xbf16>
    %c4_49 = arith.constant 4 : index
    %c128_50 = arith.constant 128 : index
    %29 = vector.load %arg7[%c4_49, %c128_50] : memref<16x256xbf16, #tpu.memory_space<vmem>>, vector<4x64xbf16>
    tpu.vector_store %arg7[%c4_49, %c128_50], %28 {strides = array<i32>} : memref<16x256xbf16, #tpu.memory_space<vmem>>, vector<4x64xbf16>,
    %c0_51 = arith.constant 0 : index
    %c3_52 = arith.constant 3 : index
    %c0_53 = arith.constant 0 : index
    %c0_54 = arith.constant 0 : index
    %30 = vector.load %arg1[%c0_51, %c3_52, %c0_53, %c0_54] : memref<1x5x5x64xbf16, #tpu.memory_space<vmem>>, vector<1x1x4x64xbf16>
    %31 = vector.shape_cast %30 : vector<1x1x4x64xbf16> to vector<4x64xbf16>
    %c8_55 = arith.constant 8 : index
    %c128_56 = arith.constant 128 : index
    %32 = vector.load %arg7[%c8_55, %c128_56] : memref<16x256xbf16, #tpu.memory_space<vmem>>, vector<4x64xbf16>
    tpu.vector_store %arg7[%c8_55, %c128_56], %31 {strides = array<i32>} : memref<16x256xbf16, #tpu.memory_space<vmem>>, vector<4x64xbf16>,
    %c0_57 = arith.constant 0 : index
    %c4_58 = arith.constant 4 : index
    %c0_59 = arith.constant 0 : index
    %c0_60 = arith.constant 0 : index
    %33 = vector.load %arg1[%c0_57, %c4_58, %c0_59, %c0_60] : memref<1x5x5x64xbf16, #tpu.memory_space<vmem>>, vector<1x1x4x64xbf16>
    %34 = vector.shape_cast %33 : vector<1x1x4x64xbf16> to vector<4x64xbf16>
    %c12_61 = arith.constant 12 : index
    %c128_62 = arith.constant 128 : index
    %35 = vector.load %arg7[%c12_61, %c128_62] : memref<16x256xbf16, #tpu.memory_space<vmem>>, vector<4x64xbf16>
    tpu.vector_store %arg7[%c12_61, %c128_62], %34 {strides = array<i32>} : memref<16x256xbf16, #tpu.memory_space<vmem>>, vector<4x64xbf16>,
    %c0_63 = arith.constant 0 : index
    %c1_64 = arith.constant 1 : index
    %c1_65 = arith.constant 1 : index
    %c0_66 = arith.constant 0 : index
    %36 = vector.load %arg1[%c0_63, %c1_64, %c1_65, %c0_66] : memref<1x5x5x64xbf16, #tpu.memory_space<vmem>>, vector<1x1x4x64xbf16>
    %37 = vector.shape_cast %36 : vector<1x1x4x64xbf16> to vector<4x64xbf16>
    %c0_67 = arith.constant 0 : index
    %c192 = arith.constant 192 : index
    %38 = vector.load %arg7[%c0_67, %c192] : memref<16x256xbf16, #tpu.memory_space<vmem>>, vector<4x64xbf16>
    tpu.vector_store %arg7[%c0_67, %c192], %37 {strides = array<i32>} : memref<16x256xbf16, #tpu.memory_space<vmem>>, vector<4x64xbf16>,
    %c0_68 = arith.constant 0 : index
    %c2_69 = arith.constant 2 : index
    %c1_70 = arith.constant 1 : index
    %c0_71 = arith.constant 0 : index
    %39 = vector.load %arg1[%c0_68, %c2_69, %c1_70, %c0_71] : memref<1x5x5x64xbf16, #tpu.memory_space<vmem>>, vector<1x1x4x64xbf16>
    %40 = vector.shape_cast %39 : vector<1x1x4x64xbf16> to vector<4x64xbf16>
    %c4_72 = arith.constant 4 : index
    %c192_73 = arith.constant 192 : index
    %41 = vector.load %arg7[%c4_72, %c192_73] : memref<16x256xbf16, #tpu.memory_space<vmem>>, vector<4x64xbf16>
    tpu.vector_store %arg7[%c4_72, %c192_73], %40 {strides = array<i32>} : memref<16x256xbf16, #tpu.memory_space<vmem>>, vector<4x64xbf16>,
    %c0_74 = arith.constant 0 : index
    %c3_75 = arith.constant 3 : index
    %c1_76 = arith.constant 1 : index
    %c0_77 = arith.constant 0 : index
    %42 = vector.load %arg1[%c0_74, %c3_75, %c1_76, %c0_77] : memref<1x5x5x64xbf16, #tpu.memory_space<vmem>>, vector<1x1x4x64xbf16>
    %43 = vector.shape_cast %42 : vector<1x1x4x64xbf16> to vector<4x64xbf16>
    %c8_78 = arith.constant 8 : index
    %c192_79 = arith.constant 192 : index
    %44 = vector.load %arg7[%c8_78, %c192_79] : memref<16x256xbf16, #tpu.memory_space<vmem>>, vector<4x64xbf16>
    tpu.vector_store %arg7[%c8_78, %c192_79], %43 {strides = array<i32>} : memref<16x256xbf16, #tpu.memory_space<vmem>>, vector<4x64xbf16>,
    %c0_80 = arith.constant 0 : index
    %c4_81 = arith.constant 4 : index
    %c1_82 = arith.constant 1 : index
    %c0_83 = arith.constant 0 : index
    %45 = vector.load %arg1[%c0_80, %c4_81, %c1_82, %c0_83] : memref<1x5x5x64xbf16, #tpu.memory_space<vmem>>, vector<1x1x4x64xbf16>
    %46 = vector.shape_cast %45 : vector<1x1x4x64xbf16> to vector<4x64xbf16>
    %c12_84 = arith.constant 12 : index
    %c192_85 = arith.constant 192 : index
    %47 = vector.load %arg7[%c12_84, %c192_85] : memref<16x256xbf16, #tpu.memory_space<vmem>>, vector<4x64xbf16>
    tpu.vector_store %arg7[%c12_84, %c192_85], %46 {strides = array<i32>} : memref<16x256xbf16, #tpu.memory_space<vmem>>, vector<4x64xbf16>,
    %c0_86 = arith.constant 0 : index
    %c0_87 = arith.constant 0 : index
    %48 = vector.load %arg7[%c0_86, %c0_87] : memref<16x256xbf16, #tpu.memory_space<vmem>>, vector<16x256xbf16>
    %cst = arith.constant 0.000000e+00 : bf16
    %49 = vector.broadcast %cst : bf16 to vector<16x144xbf16>
    %c0_88 = arith.constant 0 : index
    %c0_89 = arith.constant 0 : index
    %50 = vector.load %arg8[%c0_88, %c0_89] : memref<16x144xbf16, #tpu.memory_space<vmem>>, vector<16x144xbf16>
    tpu.vector_store %arg8[%c0_88, %c0_89], %49 {strides = array<i32>} : memref<16x144xbf16, #tpu.memory_space<vmem>>, vector<16x144xbf16>,
    %c0_90 = arith.constant 0 : index
    %c0_91 = arith.constant 0 : index
    %51 = vector.load %arg3[%c0_90, %c0_91] : memref<1x16xf32, #tpu.memory_space<vmem>>, vector<1x16xf32>
    %c0_92 = arith.constant 0 : index
    %c0_93 = arith.constant 0 : index
    %c0_94 = arith.constant 0 : index
    %52 = vector.load %arg2[%c0_92, %c0_93, %c0_94] : memref<4x256x16xbf16, #tpu.memory_space<vmem>>, vector<1x256x16xbf16>
    %53 = vector.shape_cast %52 : vector<1x256x16xbf16> to vector<256x16xbf16>
    %cst_95 = arith.constant dense<0.000000e+00> : vector<16x16xf32>
    %54 = tpu.matmul %48, %53, %cst_95 {dimension_numbers = #tpu.dot_dimension_numbers<[1], [0], [0], [1], [0, 0, 1, 1], [], []>} : vector<16x256xbf16>, vector<256x16xbf16>, vector<16x16xf32> -> vector<16x16xf32>
    %55 = vector.broadcast %51 : vector<1x16xf32> to vector<16x16xf32>
    %56 = arith.addf %54, %55 : vector<16x16xf32>
    %cst_96 = arith.constant 5.000000e-01 : f32
    %57 = vector.broadcast %cst_96 : f32 to vector<16x16xf32>
    %58 = arith.mulf %57, %56 : vector<16x16xf32>
    %cst_97 = arith.constant 0.707106769 : f32
    %59 = vector.broadcast %cst_97 : f32 to vector<16x16xf32>
    %60 = arith.mulf %56, %59 : vector<16x16xf32>
    %61 = math.absf %60 : vector<16x16xf32>
    %cst_98 = arith.constant 0.327591091 : f32
    %62 = vector.broadcast %cst_98 : f32 to vector<16x16xf32>
    %63 = arith.mulf %62, %61 : vector<16x16xf32>
    %cst_99 = arith.constant 1.000000e+00 : f32
    %64 = vector.broadcast %cst_99 : f32 to vector<16x16xf32>
    %65 = arith.addf %64, %63 : vector<16x16xf32>
    %cst_100 = arith.constant 1.000000e+00 : f32
    %66 = vector.broadcast %cst_100 : f32 to vector<16x16xf32>
    %67 = arith.divf %66, %65 : vector<16x16xf32>
    %cst_101 = arith.constant 1.06140542 : f32
    %68 = vector.broadcast %cst_101 : f32 to vector<16x16xf32>
    %69 = arith.mulf %68, %67 : vector<16x16xf32>
    %cst_102 = arith.constant -1.45315206 : f32
    %70 = vector.broadcast %cst_102 : f32 to vector<16x16xf32>
    %71 = arith.addf %69, %70 : vector<16x16xf32>
    %72 = arith.mulf %71, %67 : vector<16x16xf32>
    %cst_103 = arith.constant 1.42141378 : f32
    %73 = vector.broadcast %cst_103 : f32 to vector<16x16xf32>
    %74 = arith.addf %72, %73 : vector<16x16xf32>
    %75 = arith.mulf %74, %67 : vector<16x16xf32>
    %cst_104 = arith.constant -0.284496725 : f32
    %76 = vector.broadcast %cst_104 : f32 to vector<16x16xf32>
    %77 = arith.addf %75, %76 : vector<16x16xf32>
    %78 = arith.mulf %77, %67 : vector<16x16xf32>
    %cst_105 = arith.constant 0.254829586 : f32
    %79 = vector.broadcast %cst_105 : f32 to vector<16x16xf32>
    %80 = arith.addf %78, %79 : vector<16x16xf32>
    %81 = arith.mulf %80, %67 : vector<16x16xf32>
    %cst_106 = arith.constant 0.000000e+00 : f32
    %82 = vector.broadcast %cst_106 : f32 to vector<16x16xf32>
    %83 = arith.subf %82, %61 : vector<16x16xf32>
    %84 = arith.mulf %83, %61 : vector<16x16xf32>
    %85 = math.exp %84 : vector<16x16xf32>
    %86 = arith.mulf %81, %85 : vector<16x16xf32>
    %cst_107 = arith.constant 1.000000e+00 : f32
    %87 = vector.broadcast %cst_107 : f32 to vector<16x16xf32>
    %88 = arith.subf %87, %86 : vector<16x16xf32>
    %cst_108 = arith.constant 0.000000e+00 : f32
    %89 = vector.broadcast %cst_108 : f32 to vector<16x16xf32>
    %90 = arith.cmpf oge, %60, %89 : vector<16x16xf32>
    %cst_109 = arith.constant 0.000000e+00 : f32
    %91 = vector.broadcast %cst_109 : f32 to vector<16x16xf32>
    %92 = arith.subf %91, %88 : vector<16x16xf32>
    %93 = arith.select %90, %88, %92 : vector<16x16xi1>, vector<16x16xf32>
    %cst_110 = arith.constant 1.000000e+00 : f32
    %94 = vector.broadcast %cst_110 : f32 to vector<16x16xf32>
    %95 = arith.addf %94, %93 : vector<16x16xf32>
    %96 = arith.mulf %58, %95 : vector<16x16xf32>
    %97 = arith.truncf %96 : vector<16x16xf32> to vector<16x16xbf16>
    %98 = vector.extract_strided_slice %97 {offsets = [0, 0], sizes = [4, 16], strides = [1, 1]} : vector<16x16xbf16> to vector<4x16xbf16>
    %c0_111 = arith.constant 0 : index
    %c64_112 = arith.constant 64 : index
    %99 = vector.load %arg8[%c0_111, %c64_112] : memref<16x144xbf16, #tpu.memory_space<vmem>>, vector<4x16xbf16>
    tpu.vector_store %arg8[%c0_111, %c64_112], %98 {strides = array<i32>} : memref<16x144xbf16, #tpu.memory_space<vmem>>, vector<4x16xbf16>,
    %100 = vector.extract_strided_slice %97 {offsets = [4, 0], sizes = [4, 16], strides = [1, 1]} : vector<16x16xbf16> to vector<4x16xbf16>
    %c4_113 = arith.constant 4 : index
    %c64_114 = arith.constant 64 : index
    %101 = vector.load %arg8[%c4_113, %c64_114] : memref<16x144xbf16, #tpu.memory_space<vmem>>, vector<4x16xbf16>
    tpu.vector_store %arg8[%c4_113, %c64_114], %100 {strides = array<i32>} : memref<16x144xbf16, #tpu.memory_space<vmem>>, vector<4x16xbf16>,
    %102 = vector.extract_strided_slice %97 {offsets = [8, 0], sizes = [4, 16], strides = [1, 1]} : vector<16x16xbf16> to vector<4x16xbf16>
    %c8_115 = arith.constant 8 : index
    %c64_116 = arith.constant 64 : index
    %103 = vector.load %arg8[%c8_115, %c64_116] : memref<16x144xbf16, #tpu.memory_space<vmem>>, vector<4x16xbf16>
    tpu.vector_store %arg8[%c8_115, %c64_116], %102 {strides = array<i32>} : memref<16x144xbf16, #tpu.memory_space<vmem>>, vector<4x16xbf16>,
    %104 = vector.extract_strided_slice %97 {offsets = [12, 0], sizes = [4, 16], strides = [1, 1]} : vector<16x16xbf16> to vector<4x16xbf16>
    %c12_117 = arith.constant 12 : index
    %c64_118 = arith.constant 64 : index
    %105 = vector.load %arg8[%c12_117, %c64_118] : memref<16x144xbf16, #tpu.memory_space<vmem>>, vector<4x16xbf16>
    tpu.vector_store %arg8[%c12_117, %c64_118], %104 {strides = array<i32>} : memref<16x144xbf16, #tpu.memory_space<vmem>>, vector<4x16xbf16>,
    %c1_119 = arith.constant 1 : index
    %c0_120 = arith.constant 0 : index
    %c0_121 = arith.constant 0 : index
    %106 = vector.load %arg2[%c1_119, %c0_120, %c0_121] : memref<4x256x16xbf16, #tpu.memory_space<vmem>>, vector<1x256x16xbf16>
    %107 = vector.shape_cast %106 : vector<1x256x16xbf16> to vector<256x16xbf16>
    %cst_122 = arith.constant dense<0.000000e+00> : vector<16x16xf32>
    %108 = tpu.matmul %48, %107, %cst_122 {dimension_numbers = #tpu.dot_dimension_numbers<[1], [0], [0], [1], [0, 0, 1, 1], [], []>} : vector<16x256xbf16>, vector<256x16xbf16>, vector<16x16xf32> -> vector<16x16xf32>
    %109 = vector.broadcast %51 : vector<1x16xf32> to vector<16x16xf32>
    %110 = arith.addf %108, %109 : vector<16x16xf32>
    %cst_123 = arith.constant 5.000000e-01 : f32
    %111 = vector.broadcast %cst_123 : f32 to vector<16x16xf32>
    %112 = arith.mulf %111, %110 : vector<16x16xf32>
    %cst_124 = arith.constant 0.707106769 : f32
    %113 = vector.broadcast %cst_124 : f32 to vector<16x16xf32>
    %114 = arith.mulf %110, %113 : vector<16x16xf32>
    %115 = math.absf %114 : vector<16x16xf32>
    %cst_125 = arith.constant 0.327591091 : f32
    %116 = vector.broadcast %cst_125 : f32 to vector<16x16xf32>
    %117 = arith.mulf %116, %115 : vector<16x16xf32>
    %cst_126 = arith.constant 1.000000e+00 : f32
    %118 = vector.broadcast %cst_126 : f32 to vector<16x16xf32>
    %119 = arith.addf %118, %117 : vector<16x16xf32>
    %cst_127 = arith.constant 1.000000e+00 : f32
    %120 = vector.broadcast %cst_127 : f32 to vector<16x16xf32>
    %121 = arith.divf %120, %119 : vector<16x16xf32>
    %cst_128 = arith.constant 1.06140542 : f32
    %122 = vector.broadcast %cst_128 : f32 to vector<16x16xf32>
    %123 = arith.mulf %122, %121 : vector<16x16xf32>
    %cst_129 = arith.constant -1.45315206 : f32
    %124 = vector.broadcast %cst_129 : f32 to vector<16x16xf32>
    %125 = arith.addf %123, %124 : vector<16x16xf32>
    %126 = arith.mulf %125, %121 : vector<16x16xf32>
    %cst_130 = arith.constant 1.42141378 : f32
    %127 = vector.broadcast %cst_130 : f32 to vector<16x16xf32>
    %128 = arith.addf %126, %127 : vector<16x16xf32>
    %129 = arith.mulf %128, %121 : vector<16x16xf32>
    %cst_131 = arith.constant -0.284496725 : f32
    %130 = vector.broadcast %cst_131 : f32 to vector<16x16xf32>
    %131 = arith.addf %129, %130 : vector<16x16xf32>
    %132 = arith.mulf %131, %121 : vector<16x16xf32>
    %cst_132 = arith.constant 0.254829586 : f32
    %133 = vector.broadcast %cst_132 : f32 to vector<16x16xf32>
    %134 = arith.addf %132, %133 : vector<16x16xf32>
    %135 = arith.mulf %134, %121 : vector<16x16xf32>
    %cst_133 = arith.constant 0.000000e+00 : f32
    %136 = vector.broadcast %cst_133 : f32 to vector<16x16xf32>
    %137 = arith.subf %136, %115 : vector<16x16xf32>
    %138 = arith.mulf %137, %115 : vector<16x16xf32>
    %139 = math.exp %138 : vector<16x16xf32>
    %140 = arith.mulf %135, %139 : vector<16x16xf32>
    %cst_134 = arith.constant 1.000000e+00 : f32
    %141 = vector.broadcast %cst_134 : f32 to vector<16x16xf32>
    %142 = arith.subf %141, %140 : vector<16x16xf32>
    %cst_135 = arith.constant 0.000000e+00 : f32
    %143 = vector.broadcast %cst_135 : f32 to vector<16x16xf32>
    %144 = arith.cmpf oge, %114, %143 : vector<16x16xf32>
    %cst_136 = arith.constant 0.000000e+00 : f32
    %145 = vector.broadcast %cst_136 : f32 to vector<16x16xf32>
    %146 = arith.subf %145, %142 : vector<16x16xf32>
    %147 = arith.select %144, %142, %146 : vector<16x16xi1>, vector<16x16xf32>
    %cst_137 = arith.constant 1.000000e+00 : f32
    %148 = vector.broadcast %cst_137 : f32 to vector<16x16xf32>
    %149 = arith.addf %148, %147 : vector<16x16xf32>
    %150 = arith.mulf %112, %149 : vector<16x16xf32>
    %151 = arith.truncf %150 : vector<16x16xf32> to vector<16x16xbf16>
    %152 = vector.extract_strided_slice %151 {offsets = [0, 0], sizes = [3, 16], strides = [1, 1]} : vector<16x16xbf16> to vector<3x16xbf16>
    %c1_138 = arith.constant 1 : index
    %c48 = arith.constant 48 : index
    %153 = vector.load %arg8[%c1_138, %c48] : memref<16x144xbf16, #tpu.memory_space<vmem>>, vector<3x16xbf16>
    tpu.vector_store %arg8[%c1_138, %c48], %152 {strides = array<i32>} : memref<16x144xbf16, #tpu.memory_space<vmem>>, vector<3x16xbf16>,
    %154 = vector.extract_strided_slice %151 {offsets = [4, 0], sizes = [3, 16], strides = [1, 1]} : vector<16x16xbf16> to vector<3x16xbf16>
    %c5 = arith.constant 5 : index
    %c48_139 = arith.constant 48 : index
    %155 = vector.load %arg8[%c5, %c48_139] : memref<16x144xbf16, #tpu.memory_space<vmem>>, vector<3x16xbf16>
    tpu.vector_store %arg8[%c5, %c48_139], %154 {strides = array<i32>} : memref<16x144xbf16, #tpu.memory_space<vmem>>, vector<3x16xbf16>,
    %156 = vector.extract_strided_slice %151 {offsets = [8, 0], sizes = [3, 16], strides = [1, 1]} : vector<16x16xbf16> to vector<3x16xbf16>
    %c9 = arith.constant 9 : index
    %c48_140 = arith.constant 48 : index
    %157 = vector.load %arg8[%c9, %c48_140] : memref<16x144xbf16, #tpu.memory_space<vmem>>, vector<3x16xbf16>
    tpu.vector_store %arg8[%c9, %c48_140], %156 {strides = array<i32>} : memref<16x144xbf16, #tpu.memory_space<vmem>>, vector<3x16xbf16>,
    %158 = vector.extract_strided_slice %151 {offsets = [12, 0], sizes = [3, 16], strides = [1, 1]} : vector<16x16xbf16> to vector<3x16xbf16>
    %c13 = arith.constant 13 : index
    %c48_141 = arith.constant 48 : index
    %159 = vector.load %arg8[%c13, %c48_141] : memref<16x144xbf16, #tpu.memory_space<vmem>>, vector<3x16xbf16>
    tpu.vector_store %arg8[%c13, %c48_141], %158 {strides = array<i32>} : memref<16x144xbf16, #tpu.memory_space<vmem>>, vector<3x16xbf16>,
    %160 = vector.extract_strided_slice %151 {offsets = [0, 0], sizes = [4, 16], strides = [1, 1]} : vector<16x16xbf16> to vector<4x16xbf16>
    %c0_142 = arith.constant 0 : index
    %c80 = arith.constant 80 : index
    %161 = vector.load %arg8[%c0_142, %c80] : memref<16x144xbf16, #tpu.memory_space<vmem>>, vector<4x16xbf16>
    tpu.vector_store %arg8[%c0_142, %c80], %160 {strides = array<i32>} : memref<16x144xbf16, #tpu.memory_space<vmem>>, vector<4x16xbf16>,
    %162 = vector.extract_strided_slice %151 {offsets = [4, 0], sizes = [4, 16], strides = [1, 1]} : vector<16x16xbf16> to vector<4x16xbf16>
    %c4_143 = arith.constant 4 : index
    %c80_144 = arith.constant 80 : index
    %163 = vector.load %arg8[%c4_143, %c80_144] : memref<16x144xbf16, #tpu.memory_space<vmem>>, vector<4x16xbf16>
    tpu.vector_store %arg8[%c4_143, %c80_144], %162 {strides = array<i32>} : memref<16x144xbf16, #tpu.memory_space<vmem>>, vector<4x16xbf16>,
    %164 = vector.extract_strided_slice %151 {offsets = [8, 0], sizes = [4, 16], strides = [1, 1]} : vector<16x16xbf16> to vector<4x16xbf16>
    %c8_145 = arith.constant 8 : index
    %c80_146 = arith.constant 80 : index
    %165 = vector.load %arg8[%c8_145, %c80_146] : memref<16x144xbf16, #tpu.memory_space<vmem>>, vector<4x16xbf16>
    tpu.vector_store %arg8[%c8_145, %c80_146], %164 {strides = array<i32>} : memref<16x144xbf16, #tpu.memory_space<vmem>>, vector<4x16xbf16>,
    %166 = vector.extract_strided_slice %151 {offsets = [12, 0], sizes = [4, 16], strides = [1, 1]} : vector<16x16xbf16> to vector<4x16xbf16>
    %c12_147 = arith.constant 12 : index
    %c80_148 = arith.constant 80 : index
    %167 = vector.load %arg8[%c12_147, %c80_148] : memref<16x144xbf16, #tpu.memory_space<vmem>>, vector<4x16xbf16>
    tpu.vector_store %arg8[%c12_147, %c80_148], %166 {strides = array<i32>} : memref<16x144xbf16, #tpu.memory_space<vmem>>, vector<4x16xbf16>,
    %c2_149 = arith.constant 2 : index
    %c0_150 = arith.constant 0 : index
    %c0_151 = arith.constant 0 : index
    %168 = vector.load %arg2[%c2_149, %c0_150, %c0_151] : memref<4x256x16xbf16, #tpu.memory_space<vmem>>, vector<1x256x16xbf16>
    %169 = vector.shape_cast %168 : vector<1x256x16xbf16> to vector<256x16xbf16>
    %cst_152 = arith.constant dense<0.000000e+00> : vector<16x16xf32>
    %170 = tpu.matmul %48, %169, %cst_152 {dimension_numbers = #tpu.dot_dimension_numbers<[1], [0], [0], [1], [0, 0, 1, 1], [], []>} : vector<16x256xbf16>, vector<256x16xbf16>, vector<16x16xf32> -> vector<16x16xf32>
    %171 = vector.broadcast %51 : vector<1x16xf32> to vector<16x16xf32>
    %172 = arith.addf %170, %171 : vector<16x16xf32>
    %cst_153 = arith.constant 5.000000e-01 : f32
    %173 = vector.broadcast %cst_153 : f32 to vector<16x16xf32>
    %174 = arith.mulf %173, %172 : vector<16x16xf32>
    %cst_154 = arith.constant 0.707106769 : f32
    %175 = vector.broadcast %cst_154 : f32 to vector<16x16xf32>
    %176 = arith.mulf %172, %175 : vector<16x16xf32>
    %177 = math.absf %176 : vector<16x16xf32>
    %cst_155 = arith.constant 0.327591091 : f32
    %178 = vector.broadcast %cst_155 : f32 to vector<16x16xf32>
    %179 = arith.mulf %178, %177 : vector<16x16xf32>
    %cst_156 = arith.constant 1.000000e+00 : f32
    %180 = vector.broadcast %cst_156 : f32 to vector<16x16xf32>
    %181 = arith.addf %180, %179 : vector<16x16xf32>
    %cst_157 = arith.constant 1.000000e+00 : f32
    %182 = vector.broadcast %cst_157 : f32 to vector<16x16xf32>
    %183 = arith.divf %182, %181 : vector<16x16xf32>
    %cst_158 = arith.constant 1.06140542 : f32
    %184 = vector.broadcast %cst_158 : f32 to vector<16x16xf32>
    %185 = arith.mulf %184, %183 : vector<16x16xf32>
    %cst_159 = arith.constant -1.45315206 : f32
    %186 = vector.broadcast %cst_159 : f32 to vector<16x16xf32>
    %187 = arith.addf %185, %186 : vector<16x16xf32>
    %188 = arith.mulf %187, %183 : vector<16x16xf32>
    %cst_160 = arith.constant 1.42141378 : f32
    %189 = vector.broadcast %cst_160 : f32 to vector<16x16xf32>
    %190 = arith.addf %188, %189 : vector<16x16xf32>
    %191 = arith.mulf %190, %183 : vector<16x16xf32>
    %cst_161 = arith.constant -0.284496725 : f32
    %192 = vector.broadcast %cst_161 : f32 to vector<16x16xf32>
    %193 = arith.addf %191, %192 : vector<16x16xf32>
    %194 = arith.mulf %193, %183 : vector<16x16xf32>
    %cst_162 = arith.constant 0.254829586 : f32
    %195 = vector.broadcast %cst_162 : f32 to vector<16x16xf32>
    %196 = arith.addf %194, %195 : vector<16x16xf32>
    %197 = arith.mulf %196, %183 : vector<16x16xf32>
    %cst_163 = arith.constant 0.000000e+00 : f32
    %198 = vector.broadcast %cst_163 : f32 to vector<16x16xf32>
    %199 = arith.subf %198, %177 : vector<16x16xf32>
    %200 = arith.mulf %199, %177 : vector<16x16xf32>
    %201 = math.exp %200 : vector<16x16xf32>
    %202 = arith.mulf %197, %201 : vector<16x16xf32>
    %cst_164 = arith.constant 1.000000e+00 : f32
    %203 = vector.broadcast %cst_164 : f32 to vector<16x16xf32>
    %204 = arith.subf %203, %202 : vector<16x16xf32>
    %cst_165 = arith.constant 0.000000e+00 : f32
    %205 = vector.broadcast %cst_165 : f32 to vector<16x16xf32>
    %206 = arith.cmpf oge, %176, %205 : vector<16x16xf32>
    %cst_166 = arith.constant 0.000000e+00 : f32
    %207 = vector.broadcast %cst_166 : f32 to vector<16x16xf32>
    %208 = arith.subf %207, %204 : vector<16x16xf32>
    %209 = arith.select %206, %204, %208 : vector<16x16xi1>, vector<16x16xf32>
    %cst_167 = arith.constant 1.000000e+00 : f32
    %210 = vector.broadcast %cst_167 : f32 to vector<16x16xf32>
    %211 = arith.addf %210, %209 : vector<16x16xf32>
    %212 = arith.mulf %174, %211 : vector<16x16xf32>
    %213 = arith.truncf %212 : vector<16x16xf32> to vector<16x16xbf16>
    %214 = vector.extract_strided_slice %213 {offsets = [0, 0], sizes = [4, 16], strides = [1, 1]} : vector<16x16xbf16> to vector<4x16xbf16>
    %c4_168 = arith.constant 4 : index
    %c16 = arith.constant 16 : index
    %215 = vector.load %arg8[%c4_168, %c16] : memref<16x144xbf16, #tpu.memory_space<vmem>>, vector<4x16xbf16>
    tpu.vector_store %arg8[%c4_168, %c16], %214 {strides = array<i32>} : memref<16x144xbf16, #tpu.memory_space<vmem>>, vector<4x16xbf16>,
    %216 = vector.extract_strided_slice %213 {offsets = [4, 0], sizes = [4, 16], strides = [1, 1]} : vector<16x16xbf16> to vector<4x16xbf16>
    %c8_169 = arith.constant 8 : index
    %c16_170 = arith.constant 16 : index
    %217 = vector.load %arg8[%c8_169, %c16_170] : memref<16x144xbf16, #tpu.memory_space<vmem>>, vector<4x16xbf16>
    tpu.vector_store %arg8[%c8_169, %c16_170], %216 {strides = array<i32>} : memref<16x144xbf16, #tpu.memory_space<vmem>>, vector<4x16xbf16>,
    %218 = vector.extract_strided_slice %213 {offsets = [8, 0], sizes = [4, 16], strides = [1, 1]} : vector<16x16xbf16> to vector<4x16xbf16>
    %c12_171 = arith.constant 12 : index
    %c16_172 = arith.constant 16 : index
    %219 = vector.load %arg8[%c12_171, %c16_172] : memref<16x144xbf16, #tpu.memory_space<vmem>>, vector<4x16xbf16>
    tpu.vector_store %arg8[%c12_171, %c16_172], %218 {strides = array<i32>} : memref<16x144xbf16, #tpu.memory_space<vmem>>, vector<4x16xbf16>,
    %220 = vector.extract_strided_slice %213 {offsets = [0, 0], sizes = [4, 16], strides = [1, 1]} : vector<16x16xbf16> to vector<4x16xbf16>
    %c0_173 = arith.constant 0 : index
    %c112 = arith.constant 112 : index
    %221 = vector.load %arg8[%c0_173, %c112] : memref<16x144xbf16, #tpu.memory_space<vmem>>, vector<4x16xbf16>
    tpu.vector_store %arg8[%c0_173, %c112], %220 {strides = array<i32>} : memref<16x144xbf16, #tpu.memory_space<vmem>>, vector<4x16xbf16>,
    %222 = vector.extract_strided_slice %213 {offsets = [4, 0], sizes = [4, 16], strides = [1, 1]} : vector<16x16xbf16> to vector<4x16xbf16>
    %c4_174 = arith.constant 4 : index
    %c112_175 = arith.constant 112 : index
    %223 = vector.load %arg8[%c4_174, %c112_175] : memref<16x144xbf16, #tpu.memory_space<vmem>>, vector<4x16xbf16>
    tpu.vector_store %arg8[%c4_174, %c112_175], %222 {strides = array<i32>} : memref<16x144xbf16, #tpu.memory_space<vmem>>, vector<4x16xbf16>,
    %224 = vector.extract_strided_slice %213 {offsets = [8, 0], sizes = [4, 16], strides = [1, 1]} : vector<16x16xbf16> to vector<4x16xbf16>
    %c8_176 = arith.constant 8 : index
    %c112_177 = arith.constant 112 : index
    %225 = vector.load %arg8[%c8_176, %c112_177] : memref<16x144xbf16, #tpu.memory_space<vmem>>, vector<4x16xbf16>
    tpu.vector_store %arg8[%c8_176, %c112_177], %224 {strides = array<i32>} : memref<16x144xbf16, #tpu.memory_space<vmem>>, vector<4x16xbf16>,
    %226 = vector.extract_strided_slice %213 {offsets = [12, 0], sizes = [4, 16], strides = [1, 1]} : vector<16x16xbf16> to vector<4x16xbf16>
    %c12_178 = arith.constant 12 : index
    %c112_179 = arith.constant 112 : index
    %227 = vector.load %arg8[%c12_178, %c112_179] : memref<16x144xbf16, #tpu.memory_space<vmem>>, vector<4x16xbf16>
    tpu.vector_store %arg8[%c12_178, %c112_179], %226 {strides = array<i32>} : memref<16x144xbf16, #tpu.memory_space<vmem>>, vector<4x16xbf16>,
    %c3_180 = arith.constant 3 : index
    %c0_181 = arith.constant 0 : index
    %c0_182 = arith.constant 0 : index
    %228 = vector.load %arg2[%c3_180, %c0_181, %c0_182] : memref<4x256x16xbf16, #tpu.memory_space<vmem>>, vector<1x256x16xbf16>
    %229 = vector.shape_cast %228 : vector<1x256x16xbf16> to vector<256x16xbf16>
    %cst_183 = arith.constant dense<0.000000e+00> : vector<16x16xf32>
    %230 = tpu.matmul %48, %229, %cst_183 {dimension_numbers = #tpu.dot_dimension_numbers<[1], [0], [0], [1], [0, 0, 1, 1], [], []>} : vector<16x256xbf16>, vector<256x16xbf16>, vector<16x16xf32> -> vector<16x16xf32>
    %231 = vector.broadcast %51 : vector<1x16xf32> to vector<16x16xf32>
    %232 = arith.addf %230, %231 : vector<16x16xf32>
    %cst_184 = arith.constant 5.000000e-01 : f32
    %233 = vector.broadcast %cst_184 : f32 to vector<16x16xf32>
    %234 = arith.mulf %233, %232 : vector<16x16xf32>
    %cst_185 = arith.constant 0.707106769 : f32
    %235 = vector.broadcast %cst_185 : f32 to vector<16x16xf32>
    %236 = arith.mulf %232, %235 : vector<16x16xf32>
    %237 = math.absf %236 : vector<16x16xf32>
    %cst_186 = arith.constant 0.327591091 : f32
    %238 = vector.broadcast %cst_186 : f32 to vector<16x16xf32>
    %239 = arith.mulf %238, %237 : vector<16x16xf32>
    %cst_187 = arith.constant 1.000000e+00 : f32
    %240 = vector.broadcast %cst_187 : f32 to vector<16x16xf32>
    %241 = arith.addf %240, %239 : vector<16x16xf32>
    %cst_188 = arith.constant 1.000000e+00 : f32
    %242 = vector.broadcast %cst_188 : f32 to vector<16x16xf32>
    %243 = arith.divf %242, %241 : vector<16x16xf32>
    %cst_189 = arith.constant 1.06140542 : f32
    %244 = vector.broadcast %cst_189 : f32 to vector<16x16xf32>
    %245 = arith.mulf %244, %243 : vector<16x16xf32>
    %cst_190 = arith.constant -1.45315206 : f32
    %246 = vector.broadcast %cst_190 : f32 to vector<16x16xf32>
    %247 = arith.addf %245, %246 : vector<16x16xf32>
    %248 = arith.mulf %247, %243 : vector<16x16xf32>
    %cst_191 = arith.constant 1.42141378 : f32
    %249 = vector.broadcast %cst_191 : f32 to vector<16x16xf32>
    %250 = arith.addf %248, %249 : vector<16x16xf32>
    %251 = arith.mulf %250, %243 : vector<16x16xf32>
    %cst_192 = arith.constant -0.284496725 : f32
    %252 = vector.broadcast %cst_192 : f32 to vector<16x16xf32>
    %253 = arith.addf %251, %252 : vector<16x16xf32>
    %254 = arith.mulf %253, %243 : vector<16x16xf32>
    %cst_193 = arith.constant 0.254829586 : f32
    %255 = vector.broadcast %cst_193 : f32 to vector<16x16xf32>
    %256 = arith.addf %254, %255 : vector<16x16xf32>
    %257 = arith.mulf %256, %243 : vector<16x16xf32>
    %cst_194 = arith.constant 0.000000e+00 : f32
    %258 = vector.broadcast %cst_194 : f32 to vector<16x16xf32>
    %259 = arith.subf %258, %237 : vector<16x16xf32>
    %260 = arith.mulf %259, %237 : vector<16x16xf32>
    %261 = math.exp %260 : vector<16x16xf32>
    %262 = arith.mulf %257, %261 : vector<16x16xf32>
    %cst_195 = arith.constant 1.000000e+00 : f32
    %263 = vector.broadcast %cst_195 : f32 to vector<16x16xf32>
    %264 = arith.subf %263, %262 : vector<16x16xf32>
    %cst_196 = arith.constant 0.000000e+00 : f32
    %265 = vector.broadcast %cst_196 : f32 to vector<16x16xf32>
    %266 = arith.cmpf oge, %236, %265 : vector<16x16xf32>
    %cst_197 = arith.constant 0.000000e+00 : f32
    %267 = vector.broadcast %cst_197 : f32 to vector<16x16xf32>
    %268 = arith.subf %267, %264 : vector<16x16xf32>
    %269 = arith.select %266, %264, %268 : vector<16x16xi1>, vector<16x16xf32>
    %cst_198 = arith.constant 1.000000e+00 : f32
    %270 = vector.broadcast %cst_198 : f32 to vector<16x16xf32>
    %271 = arith.addf %270, %269 : vector<16x16xf32>
    %272 = arith.mulf %234, %271 : vector<16x16xf32>
    %273 = arith.truncf %272 : vector<16x16xf32> to vector<16x16xbf16>
    %274 = vector.extract_strided_slice %273 {offsets = [0, 0], sizes = [3, 16], strides = [1, 1]} : vector<16x16xbf16> to vector<3x16xbf16>
    %c5_199 = arith.constant 5 : index
    %c0_200 = arith.constant 0 : index
    %275 = vector.load %arg8[%c5_199, %c0_200] : memref<16x144xbf16, #tpu.memory_space<vmem>>, vector<3x16xbf16>
    tpu.vector_store %arg8[%c5_199, %c0_200], %274 {strides = array<i32>} : memref<16x144xbf16, #tpu.memory_space<vmem>>, vector<3x16xbf16>,
    %276 = vector.extract_strided_slice %273 {offsets = [4, 0], sizes = [3, 16], strides = [1, 1]} : vector<16x16xbf16> to vector<3x16xbf16>
    %c9_201 = arith.constant 9 : index
    %c0_202 = arith.constant 0 : index
    %277 = vector.load %arg8[%c9_201, %c0_202] : memref<16x144xbf16, #tpu.memory_space<vmem>>, vector<3x16xbf16>
    tpu.vector_store %arg8[%c9_201, %c0_202], %276 {strides = array<i32>} : memref<16x144xbf16, #tpu.memory_space<vmem>>, vector<3x16xbf16>,
    %278 = vector.extract_strided_slice %273 {offsets = [8, 0], sizes = [3, 16], strides = [1, 1]} : vector<16x16xbf16> to vector<3x16xbf16>
    %c13_203 = arith.constant 13 : index
    %c0_204 = arith.constant 0 : index
    %279 = vector.load %arg8[%c13_203, %c0_204] : memref<16x144xbf16, #tpu.memory_space<vmem>>, vector<3x16xbf16>
    tpu.vector_store %arg8[%c13_203, %c0_204], %278 {strides = array<i32>} : memref<16x144xbf16, #tpu.memory_space<vmem>>, vector<3x16xbf16>,
    %280 = vector.extract_strided_slice %273 {offsets = [0, 0], sizes = [4, 16], strides = [1, 1]} : vector<16x16xbf16> to vector<4x16xbf16>
    %c4_205 = arith.constant 4 : index
    %c32 = arith.constant 32 : index
    %281 = vector.load %arg8[%c4_205, %c32] : memref<16x144xbf16, #tpu.memory_space<vmem>>, vector<4x16xbf16>
    tpu.vector_store %arg8[%c4_205, %c32], %280 {strides = array<i32>} : memref<16x144xbf16, #tpu.memory_space<vmem>>, vector<4x16xbf16>,
    %282 = vector.extract_strided_slice %273 {offsets = [4, 0], sizes = [4, 16], strides = [1, 1]} : vector<16x16xbf16> to vector<4x16xbf16>
    %c8_206 = arith.constant 8 : index
    %c32_207 = arith.constant 32 : index
    %283 = vector.load %arg8[%c8_206, %c32_207] : memref<16x144xbf16, #tpu.memory_space<vmem>>, vector<4x16xbf16>
    tpu.vector_store %arg8[%c8_206, %c32_207], %282 {strides = array<i32>} : memref<16x144xbf16, #tpu.memory_space<vmem>>, vector<4x16xbf16>,
    %284 = vector.extract_strided_slice %273 {offsets = [8, 0], sizes = [4, 16], strides = [1, 1]} : vector<16x16xbf16> to vector<4x16xbf16>
    %c12_208 = arith.constant 12 : index
    %c32_209 = arith.constant 32 : index
    %285 = vector.load %arg8[%c12_208, %c32_209] : memref<16x144xbf16, #tpu.memory_space<vmem>>, vector<4x16xbf16>
    tpu.vector_store %arg8[%c12_208, %c32_209], %284 {strides = array<i32>} : memref<16x144xbf16, #tpu.memory_space<vmem>>, vector<4x16xbf16>,
    %286 = vector.extract_strided_slice %273 {offsets = [0, 0], sizes = [3, 16], strides = [1, 1]} : vector<16x16xbf16> to vector<3x16xbf16>
    %c1_210 = arith.constant 1 : index
    %c96 = arith.constant 96 : index
    %287 = vector.load %arg8[%c1_210, %c96] : memref<16x144xbf16, #tpu.memory_space<vmem>>, vector<3x16xbf16>
    tpu.vector_store %arg8[%c1_210, %c96], %286 {strides = array<i32>} : memref<16x144xbf16, #tpu.memory_space<vmem>>, vector<3x16xbf16>,
    %288 = vector.extract_strided_slice %273 {offsets = [4, 0], sizes = [3, 16], strides = [1, 1]} : vector<16x16xbf16> to vector<3x16xbf16>
    %c5_211 = arith.constant 5 : index
    %c96_212 = arith.constant 96 : index
    %289 = vector.load %arg8[%c5_211, %c96_212] : memref<16x144xbf16, #tpu.memory_space<vmem>>, vector<3x16xbf16>
    tpu.vector_store %arg8[%c5_211, %c96_212], %288 {strides = array<i32>} : memref<16x144xbf16, #tpu.memory_space<vmem>>, vector<3x16xbf16>,
    %290 = vector.extract_strided_slice %273 {offsets = [8, 0], sizes = [3, 16], strides = [1, 1]} : vector<16x16xbf16> to vector<3x16xbf16>
    %c9_213 = arith.constant 9 : index
    %c96_214 = arith.constant 96 : index
    %291 = vector.load %arg8[%c9_213, %c96_214] : memref<16x144xbf16, #tpu.memory_space<vmem>>, vector<3x16xbf16>
    tpu.vector_store %arg8[%c9_213, %c96_214], %290 {strides = array<i32>} : memref<16x144xbf16, #tpu.memory_space<vmem>>, vector<3x16xbf16>,
    %292 = vector.extract_strided_slice %273 {offsets = [12, 0], sizes = [3, 16], strides = [1, 1]} : vector<16x16xbf16> to vector<3x16xbf16>
    %c13_215 = arith.constant 13 : index
    %c96_216 = arith.constant 96 : index
    %293 = vector.load %arg8[%c13_215, %c96_216] : memref<16x144xbf16, #tpu.memory_space<vmem>>, vector<3x16xbf16>
    tpu.vector_store %arg8[%c13_215, %c96_216], %292 {strides = array<i32>} : memref<16x144xbf16, #tpu.memory_space<vmem>>, vector<3x16xbf16>,
    %294 = vector.extract_strided_slice %273 {offsets = [0, 0], sizes = [4, 16], strides = [1, 1]} : vector<16x16xbf16> to vector<4x16xbf16>
    %c0_217 = arith.constant 0 : index
    %c128_218 = arith.constant 128 : index
    %295 = vector.load %arg8[%c0_217, %c128_218] : memref<16x144xbf16, #tpu.memory_space<vmem>>, vector<4x16xbf16>
    tpu.vector_store %arg8[%c0_217, %c128_218], %294 {strides = array<i32>} : memref<16x144xbf16, #tpu.memory_space<vmem>>, vector<4x16xbf16>,
    %296 = vector.extract_strided_slice %273 {offsets = [4, 0], sizes = [4, 16], strides = [1, 1]} : vector<16x16xbf16> to vector<4x16xbf16>
    %c4_219 = arith.constant 4 : index
    %c128_220 = arith.constant 128 : index
    %297 = vector.load %arg8[%c4_219, %c128_220] : memref<16x144xbf16, #tpu.memory_space<vmem>>, vector<4x16xbf16>
    tpu.vector_store %arg8[%c4_219, %c128_220], %296 {strides = array<i32>} : memref<16x144xbf16, #tpu.memory_space<vmem>>, vector<4x16xbf16>,
    %298 = vector.extract_strided_slice %273 {offsets = [8, 0], sizes = [4, 16], strides = [1, 1]} : vector<16x16xbf16> to vector<4x16xbf16>
    %c8_221 = arith.constant 8 : index
    %c128_222 = arith.constant 128 : index
    %299 = vector.load %arg8[%c8_221, %c128_222] : memref<16x144xbf16, #tpu.memory_space<vmem>>, vector<4x16xbf16>
    tpu.vector_store %arg8[%c8_221, %c128_222], %298 {strides = array<i32>} : memref<16x144xbf16, #tpu.memory_space<vmem>>, vector<4x16xbf16>,
    %300 = vector.extract_strided_slice %273 {offsets = [12, 0], sizes = [4, 16], strides = [1, 1]} : vector<16x16xbf16> to vector<4x16xbf16>
    %c12_223 = arith.constant 12 : index
    %c128_224 = arith.constant 128 : index
    %301 = vector.load %arg8[%c12_223, %c128_224] : memref<16x144xbf16, #tpu.memory_space<vmem>>, vector<4x16xbf16>
    tpu.vector_store %arg8[%c12_223, %c128_224], %300 {strides = array<i32>} : memref<16x144xbf16, #tpu.memory_space<vmem>>, vector<4x16xbf16>,
    %c0_225 = arith.constant 0 : index
    %c0_226 = arith.constant 0 : index
    %302 = vector.load %arg8[%c0_225, %c0_226] : memref<16x144xbf16, #tpu.memory_space<vmem>>, vector<16x144xbf16>
    %c0_227 = arith.constant 0 : index
    %c0_228 = arith.constant 0 : index
    %303 = vector.load %arg4[%c0_227, %c0_228] : memref<144x32xbf16, #tpu.memory_space<vmem>>, vector<144x32xbf16>
    %cst_229 = arith.constant dense<0.000000e+00> : vector<16x32xf32>
    %304 = tpu.matmul %302, %303, %cst_229 {dimension_numbers = #tpu.dot_dimension_numbers<[1], [0], [0], [1], [0, 0, 1, 1], [], []>} : vector<16x144xbf16>, vector<144x32xbf16>, vector<16x32xf32> -> vector<16x32xf32>
    %c0_230 = arith.constant 0 : index
    %c0_231 = arith.constant 0 : index
    %305 = vector.load %arg5[%c0_230, %c0_231] : memref<1x32xf32, #tpu.memory_space<vmem>>, vector<1x32xf32>
    %306 = vector.broadcast %305 : vector<1x32xf32> to vector<16x32xf32>
    %307 = arith.addf %304, %306 : vector<16x32xf32>
    %308 = arith.negf %307 : vector<16x32xf32>
    %309 = math.exp %308 : vector<16x32xf32>
    %cst_232 = arith.constant 1.000000e+00 : f32
    %310 = vector.broadcast %cst_232 : f32 to vector<16x32xf32>
    %311 = arith.addf %310, %309 : vector<16x32xf32>
    %312 = arith.divf %310, %311 : vector<16x32xf32>
    %313 = arith.mulf %307, %312 : vector<16x32xf32>
    %c0_233 = arith.constant 0 : index
    %c0_234 = arith.constant 0 : index
    %c0_235 = arith.constant 0 : index
    %314 = vector.load %arg6[%c0_233, %c0_234, %c0_235] : memref<1x16x32xf32, #tpu.memory_space<vmem>>, vector<1x16x32xf32>
    %315 = vector.shape_cast %314 : vector<1x16x32xf32> to vector<16x32xf32>
    %316 = vector.shape_cast %313 : vector<16x32xf32> to vector<1x16x32xf32>
    tpu.vector_store %arg6[%c0_233, %c0_234, %c0_235], %316 {strides = array<i32>} : memref<1x16x32xf32, #tpu.memory_space<vmem>>, vector<1x16x32xf32>,
    return
  }
  func.func @transform_0(%arg0: i32) -> (i32, i32, i32, i32) {
    %c0_i32 = arith.constant 0 : i32
    %c0_i32_0 = arith.constant 0 : i32
    %c0_i32_1 = arith.constant 0 : i32
    %c0_i32_2 = arith.constant 0 : i32
    return %arg0, %c0_i32, %c0_i32_0, %c0_i32_1 : i32, i32, i32, i32
  }
  func.func @transform_1(%arg0: i32) -> (i32, i32, i32) {
    %c0_i32 = arith.constant 0 : i32
    %c0_i32_0 = arith.constant 0 : i32
    %c0_i32_1 = arith.constant 0 : i32
    %c0_i32_2 = arith.constant 0 : i32
    return %c0_i32, %c0_i32_0, %c0_i32_1 : i32, i32, i32
  }
  func.func @transform_2(%arg0: i32) -> (i32, i32) {
    %c0_i32 = arith.constant 0 : i32
    %c0_i32_0 = arith.constant 0 : i32
    %c0_i32_1 = arith.constant 0 : i32
    return %c0_i32, %c0_i32_0 : i32, i32
  }
  func.func @transform_3(%arg0: i32) -> (i32, i32) {
    %c0_i32 = arith.constant 0 : i32
    %c0_i32_0 = arith.constant 0 : i32
    %c0_i32_1 = arith.constant 0 : i32
    return %c0_i32, %c0_i32_0 : i32, i32
  }
  func.func @transform_4(%arg0: i32) -> (i32, i32) {
    %c0_i32 = arith.constant 0 : i32
    %c0_i32_0 = arith.constant 0 : i32
    %c0_i32_1 = arith.constant 0 : i32
    return %c0_i32, %c0_i32_0 : i32, i32
  }
  func.func @transform_5(%arg0: i32) -> (i32, i32, i32) {
    %c0_i32 = arith.constant 0 : i32
    %c0_i32_0 = arith.constant 0 : i32
    %c0_i32_1 = arith.constant 0 : i32
    return %arg0, %c0_i32, %c0_i32_0 : i32, i32, i32
  }
}

</mosaic_0001>

<llo_original>
// kernel: simple_stem_forward.1
$region0: #{simple_stem_forward.1}
  #allocation0 [shape = 'u32[]', space=smem, size = 0x4, offset = 0x4, fixed_abs, tag = 'smem constant byte address 0x4 - core index']
  #allocation1 [shape = 'u32[72,128]{1,0:T(1,128)}', space=vmem, size = 0x9000, scoped, tag = 'internal scratch']
  #allocation2 [shape = 'bf16[16,256]{1,0:T(8,128)(2,1)}', space=vmem, size = 0x2000, scoped, tag = 'scratch operand']
  #allocation3 [shape = 'bf16[16,144]{1,0:T(8,128)(2,1)}', space=vmem, size = 0x2000, scoped, tag = 'scratch operand']
  %s0 = inlined_call_operand.vmem [shape: bf16[2,5,5,64], index: 0, kind: input, shape index: {}]
  %s1 = inlined_call_operand.vmem [shape: bf16[4,256,16], index: 1, kind: input, shape index: {}]
  %s2 = inlined_call_operand.vmem [shape: f32[1,16], index: 2, kind: input, shape index: {}]
  %s3 = inlined_call_operand.vmem [shape: bf16[144,32], index: 3, kind: input, shape index: {}]
  %s4 = inlined_call_operand.vmem [shape: f32[1,32], index: 4, kind: input, shape index: {}]
  %s5 = inlined_call_operand.hbm [shape: f32[2,16,32], index: 5, kind: output, shape index: {}]
  %s6 = sld [smem:[#allocation0]]
  $region53: #{simple_stem_forward.1} parent=0
    _
  %s8 = ssub.s32 1, %s6
  %s9 = scalar_select 0, %s8, %s6
  $region1: #{simple_stem_forward.1} parent=0
    #allocation4 [shape = 'u8[16384]{0}', space=vmem, size = 0x4000, scoped, tag = 'output window, operand 0']
    #allocation5 [shape = 's32[2]{0}', space=sflag, size = 0x8, scoped, tag = 'scoped memory for simple_stem_forward.1']
    %10 = vsyncpa [#allocation5], 0
    %s11 = scalar_lea.sflag [#allocation5], 1
    %12 = vsyncpa %s11, 0
    loop: start=0, step=1, limit=4
    $region2: #{simple_stem_forward.1} parent=1 // loop_pre_header
      _
    $region3: #{simple_stem_forward.1} parent=1 // loop_header
      %s14 = sphi 0, %s18
      %p15 = scmp.ge.s32.totalorder %s14, 4
      %s24 = sphi 0, %s26
      %s27 = sphi 0, %s24
      %s28 = sphi 0, %s27
      %s44 = sphi 0, %s28
      %s48 = sphi 0, %s48
      %s50 = sphi 0, %s48
      %s51 = sphi 0, %s50
      %s65 = sphi 0, %s51
      %s69 = sphi 0, %s69
      %s71 = sphi 0, %s69
      %s72 = sphi 0, %s71
      %s86 = sphi 0, %s72
      %s90 = sphi 0, %s90
      %s92 = sphi 0, %s90
      %s93 = sphi 0, %s92
      %s107 = sphi 0, %s93
      %s111 = sphi 0, %s111
      %s113 = sphi 0, %s111
      %s114 = sphi 0, %s113
      %s128 = sphi 0, %s114
      %s134 = sphi 0, %s136
      %s137 = sphi 0, %s134
      %s138 = sphi 0, %s137
      %s154 = sphi 0, %s138
    $region4: #{simple_stem_forward.1} parent=1 // loop_header_branch
      %17 = sbr.rel (%p15) target = $region8
    $region5: #{simple_stem_forward.1} parent=1 // loop_body
      %s19 = ssub.s32 %s14, 1
      %s20 = ssub.s32 %s14, 2
      %s21 = sadd.s32 %s14, 1
      %s22 = ssub.s32 %s14, %s21
      %p23 = scmp.eq.s32.totalorder %s22, 0
      %s25 = sadd.s32 %s24, 1
      %s26 = scalar_select %p23, %s24, %s25
      %p29 = pneg %p23
      %p30 = scmp.eq.s32.totalorder %s14, 1
      %p31 = por %p29, %p30
      %p32 = scmp.ne.s32.totalorder %s24, %s27
      %p33 = scmp.eq.s32.totalorder %s14, 0
      %p34 = por %p32, %p33
      %p35 = scmp.ne.s32.totalorder %s24, %s27
      %p36 = scmp.eq.s32.totalorder %s19, 1
      %p37 = por %p35, %p36
      %p38 = scmp.ne.s32.totalorder %s27, %s28
      %p39 = scmp.eq.s32.totalorder %s19, 0
      %p40 = por %p38, %p39
      %p41 = scmp.ne.s32.totalorder %s27, %s28
      %p42 = scmp.eq.s32.totalorder %s20, 1
      %p43 = por %p41, %p42
      %p45 = scmp.ne.s32.totalorder %s28, %s44
      %p46 = scmp.eq.s32.totalorder %s20, 0
      %p47 = por %p45, %p46
      %s49 = sadd.s32 %s48, 1
      %p52 = scmp.eq.s32.totalorder %s14, 1
      %p53 = scmp.ne.s32.totalorder %s48, %s50
      %p54 = scmp.eq.s32.totalorder %s14, 0
      %p55 = por %p53, %p54
      %p56 = scmp.ne.s32.totalorder %s48, %s50
      %p57 = scmp.eq.s32.totalorder %s19, 1
      %p58 = por %p56, %p57
      %p59 = scmp.ne.s32.totalorder %s50, %s51
      %p60 = scmp.eq.s32.totalorder %s19, 0
      %p61 = por %p59, %p60
      %p62 = scmp.ne.s32.totalorder %s50, %s51
      %p63 = scmp.eq.s32.totalorder %s20, 1
      %p64 = por %p62, %p63
      %p66 = scmp.ne.s32.totalorder %s51, %s65
      %p67 = scmp.eq.s32.totalorder %s20, 0
      %p68 = por %p66, %p67
      %s70 = sadd.s32 %s69, 1
      %p73 = scmp.eq.s32.totalorder %s14, 1
      %p74 = scmp.ne.s32.totalorder %s69, %s71
      %p75 = scmp.eq.s32.totalorder %s14, 0
      %p76 = por %p74, %p75
      %p77 = scmp.ne.s32.totalorder %s69, %s71
      %p78 = scmp.eq.s32.totalorder %s19, 1
      %p79 = por %p77, %p78
      %p80 = scmp.ne.s32.totalorder %s71, %s72
      %p81 = scmp.eq.s32.totalorder %s19, 0
      %p82 = por %p80, %p81
      %p83 = scmp.ne.s32.totalorder %s71, %s72
      %p84 = scmp.eq.s32.totalorder %s20, 1
      %p85 = por %p83, %p84
      %p87 = scmp.ne.s32.totalorder %s72, %s86
      %p88 = scmp.eq.s32.totalorder %s20, 0
      %p89 = por %p87, %p88
      %s91 = sadd.s32 %s90, 1
      %p94 = scmp.eq.s32.totalorder %s14, 1
      %p95 = scmp.ne.s32.totalorder %s90, %s92
      %p96 = scmp.eq.s32.totalorder %s14, 0
      %p97 = por %p95, %p96
      %p98 = scmp.ne.s32.totalorder %s90, %s92
      %p99 = scmp.eq.s32.totalorder %s19, 1
      %p100 = por %p98, %p99
      %p101 = scmp.ne.s32.totalorder %s92, %s93
      %p102 = scmp.eq.s32.totalorder %s19, 0
      %p103 = por %p101, %p102
      %p104 = scmp.ne.s32.totalorder %s92, %s93
      %p105 = scmp.eq.s32.totalorder %s20, 1
      %p106 = por %p104, %p105
      %p108 = scmp.ne.s32.totalorder %s93, %s107
      %p109 = scmp.eq.s32.totalorder %s20, 0
      %p110 = por %p108, %p109
      %s112 = sadd.s32 %s111, 1
      %p115 = scmp.eq.s32.totalorder %s14, 1
      %p116 = scmp.ne.s32.totalorder %s111, %s113
      %p117 = scmp.eq.s32.totalorder %s14, 0
      %p118 = por %p116, %p117
      %p119 = scmp.ne.s32.totalorder %s111, %s113
      %p120 = scmp.eq.s32.totalorder %s19, 1
      %p121 = por %p119, %p120
      %p122 = scmp.ne.s32.totalorder %s113, %s114
      %p123 = scmp.eq.s32.totalorder %s19, 0
      %p124 = por %p122, %p123
      %p125 = scmp.ne.s32.totalorder %s113, %s114
      %p126 = scmp.eq.s32.totalorder %s20, 1
      %p127 = por %p125, %p126
      %p129 = scmp.ne.s32.totalorder %s114, %s128
      %p130 = scmp.eq.s32.totalorder %s20, 0
      %p131 = por %p129, %p130
      %s132 = ssub.s32 %s14, %s21
      %p133 = scmp.eq.s32.totalorder %s132, 0
      %s135 = sadd.s32 %s134, 1
      %s136 = scalar_select %p133, %s134, %s135
      %p139 = pneg %p133
      %p140 = scmp.eq.s32.totalorder %s14, 1
      %p141 = por %p139, %p140
      %p142 = scmp.ne.s32.totalorder %s134, %s137
      %p143 = scmp.eq.s32.totalorder %s14, 0
      %p144 = por %p142, %p143
      %p145 = scmp.ne.s32.totalorder %s134, %s137
      %p146 = scmp.eq.s32.totalorder %s19, 1
      %p147 = por %p145, %p146
      %p148 = scmp.ne.s32.totalorder %s137, %s138
      %p149 = scmp.eq.s32.totalorder %s19, 0
      %p150 = por %p148, %p149
      %p151 = scmp.ne.s32.totalorder %s137, %s138
      %p152 = scmp.eq.s32.totalorder %s20, 1
      %p153 = por %p151, %p152
      %p155 = scmp.ne.s32.totalorder %s138, %s154
      %p156 = scmp.eq.s32.totalorder %s20, 0
      %p157 = por %p155, %p156
      %p158 = scmp.le.s32.totalorder 1, %s14
      %p159 = scmp.lt.s32.totalorder %s14, 3
      %p160 = pnand %p158, %p159
      %p161 = pneg %p160
      // Predicated region
      $region9: #{simple_stem_forward.1} parent=5 // pred_check
        _
      $region10: #{simple_stem_forward.1} parent=5 // pred_check_branch
        %163 = sbr.rel (%p160) target = $region12
      $region11: #{simple_stem_forward.1} parent=5 // pred_region
        %s164 = ssub.s32 %s14, 1
        // Predicated region
        $region13: #{simple_stem_forward.1} parent=11 // pred_check
          %p165 = pneg %p61
        $region14: #{simple_stem_forward.1} parent=11 // pred_check_branch
          %167 = sbr.rel (%p165) target = $region16
        $region15: #{simple_stem_forward.1} parent=11 // pred_region
          _
        $region16: #{simple_stem_forward.1} parent=11 // pred_fallthru
          _
        // Predicated region
        $region17: #{simple_stem_forward.1} parent=11 // pred_check
          %p168 = pneg %p82
        $region18: #{simple_stem_forward.1} parent=11 // pred_check_branch
          %170 = sbr.rel (%p168) target = $region20
        $region19: #{simple_stem_forward.1} parent=11 // pred_region
          _
        $region20: #{simple_stem_forward.1} parent=11 // pred_fallthru
          _
        // Predicated region
        $region21: #{simple_stem_forward.1} parent=11 // pred_check
          %p171 = pneg %p103
        $region22: #{simple_stem_forward.1} parent=11 // pred_check_branch
          %173 = sbr.rel (%p171) target = $region24
        $region23: #{simple_stem_forward.1} parent=11 // pred_region
          _
        $region24: #{simple_stem_forward.1} parent=11 // pred_fallthru
          _
        // Predicated region
        $region25: #{simple_stem_forward.1} parent=11 // pred_check
          %p174 = pneg %p124
        $region26: #{simple_stem_forward.1} parent=11 // pred_check_branch
          %176 = sbr.rel (%p174) target = $region28
        $region27: #{simple_stem_forward.1} parent=11 // pred_region
          _
        $region28: #{simple_stem_forward.1} parent=11 // pred_fallthru
          _
      $region12: #{simple_stem_forward.1} parent=5 // pred_fallthru
        _
      %p177 = scmp.lt.s32.totalorder %s14, 2
      // Predicated region
      $region29: #{simple_stem_forward.1} parent=5 // pred_check
        %p178 = pneg %p177
      $region30: #{simple_stem_forward.1} parent=5 // pred_check_branch
        %180 = sbr.rel (%p178) target = $region32
      $region31: #{simple_stem_forward.1} parent=5 // pred_region
        // Predicated region
        $region33: #{simple_stem_forward.1} parent=31 // pred_check
          %p181 = pneg %p34
        $region34: #{simple_stem_forward.1} parent=31 // pred_check_branch
          %183 = sbr.rel (%p181) target = $region36
        $region35: #{simple_stem_forward.1} parent=31 // pred_region
          %p184 = scmp.lt.s32.totalorder %s14, 1
          %s185 = scalar_select %p184, %s14, 1
          %s186 = smul.addr %s185, 5
          %s187 = smul.addr %s186, 4
          %s188 = scalar_lea.vmem %s0, %s187
        $region36: #{simple_stem_forward.1} parent=31 // pred_fallthru
          _
      $region32: #{simple_stem_forward.1} parent=5 // pred_fallthru
        _
      %p189 = scmp.le.s32.totalorder 1, %s14
      %p190 = scmp.lt.s32.totalorder %s14, 3
      %p191 = pnand %p189, %p190
      %p192 = pneg %p191
      // Predicated region
      $region37: #{simple_stem_forward.1} parent=5 // pred_check
        _
      $region38: #{simple_stem_forward.1} parent=5 // pred_check_branch
        %194 = sbr.rel (%p191) target = $region40
      $region39: #{simple_stem_forward.1} parent=5 // pred_region
        %s195 = ssub.s32 %s14, 1
        %p196 = scmp.lt.s32.totalorder %s19, 1
        %s197 = scalar_select %p196, %s19, 1
        %s198 = smul.addr %s197, 5
        %s199 = smul.addr %s198, 4
        %s200 = scalar_lea.vmem %s0, %s199
        %p201 = pneg %p40
        %p202 = pneg %p37
        %p203 = pneg %p61
        %p204 = pneg %p58
        %p205 = pneg %p82
        %p206 = pneg %p79
        %p207 = pneg %p103
        %p208 = pneg %p100
        %p209 = pneg %p124
        %p210 = pneg %p121
        %p211 = pneg %p150
        %p212 = pneg %p147
        %s213 = sand.u32 %s137, 1
        %s214 = scalar_lea.sflag [#allocation5], %s213
        %s215 = sand.u32 %s137, 1
        %s216 = smul.addr %s215, 16
        %s217 = scalar_lea.vmem [#allocation4], %s216
        %p218 = scmp.lt.s32.totalorder %s19, 1
        %s219 = scalar_select %p218, %s19, 1
        %s220 = smul.addr %s219, 5
        %s221 = smul.addr %s220, 4
        %s222 = scalar_lea.vmem %s0, %s221
        %v224 = vld [vmem:[%s222] sm:$0x3]
        %vm225 = vcmask 517120
        %226 = vst.msk [vmem:[#allocation2] sm:$0x3] %vm225, %v224
        %s227 = scalar_lea.vmem %s222, 4
        %v228 = vld [vmem:[%s227] sm:$0x3]
        %v230 = vrot.slane %v228, 6
        %vm232 = vcmask 519170
        %233 = vst.msk [vmem:[#allocation2] sm:$0xc] %vm232, %v230
        %s234 = scalar_lea.vmem %s222, 8
        %v235 = vld [vmem:[%s234] sm:$0x3]
        %236 = vst.msk [vmem:[#allocation2 + $0x8] sm:$0x3] %vm225, %v235
        %s237 = scalar_lea.vmem %s222, 12
        %v238 = vld [vmem:[%s237] sm:$0x3]
        %v240 = vrot.slane %v238, 6
        %242 = vst.msk [vmem:[#allocation2 + $0x8] sm:$0xc] %vm232, %v240
        %v243 = vld [vmem:[%s222] sm:$0x7]
        %v245 = vshrl.u32 %v243, 16
        %v247 = vrot.slane %v245, 4
        %v248 = vshll.u32 %v243, 16
        %v250 = vrot.slane %v248, 5
        %v251 = vor.u32 %v247, %v250
        %v252 = vrot.slane %v251, 4
        %253 = vrot.lane.b32.xlu0 %v252, 64
        %v254 = vpop.permute.xlu0 %253
        %vm256 = vcmask 1041920
        %257 = vst.msk [vmem:[#allocation2] sm:$0x3] %vm256, %v254
        %v258 = vld [vmem:[%s227] sm:$0x7]
        %v260 = vshrl.u32 %v258, 16
        %v262 = vrot.slane %v260, 6
        %v263 = vshll.u32 %v258, 16
        %v265 = vrot.slane %v263, 7
        %v266 = vor.u32 %v262, %v265
        %267 = vrot.lane.b32.xlu0 %v266, 64
        %v268 = vpop.permute.xlu0 %267
        %vm270 = vcmask 1043970
        %271 = vst.msk [vmem:[#allocation2] sm:$0xc] %vm270, %v268
        %v272 = vld [vmem:[%s234] sm:$0x7]
        %v274 = vshrl.u32 %v272, 16
        %v276 = vrot.slane %v274, 4
        %v277 = vshll.u32 %v272, 16
        %v279 = vrot.slane %v277, 5
        %v280 = vor.u32 %v276, %v279
        %v281 = vrot.slane %v280, 4
        %282 = vrot.lane.b32.xlu0 %v281, 64
        %v283 = vpop.permute.xlu0 %282
        %285 = vst.msk [vmem:[#allocation2 + $0x8] sm:$0x3] %vm256, %v283
        %v286 = vld [vmem:[%s237] sm:$0x7]
        %v288 = vshrl.u32 %v286, 16
        %v290 = vrot.slane %v288, 6
        %v291 = vshll.u32 %v286, 16
        %v293 = vrot.slane %v291, 7
        %v294 = vor.u32 %v290, %v293
        %295 = vrot.lane.b32.xlu0 %v294, 64
        %v296 = vpop.permute.xlu0 %295
        %298 = vst.msk [vmem:[#allocation2 + $0x8] sm:$0xc] %vm270, %v296
        %v299 = vld [vmem:[%s227] sm:$0x3]
        %300 = vst.msk [vmem:[#allocation2 + $0x4] sm:$0x3] %vm225, %v299
        %v301 = vld [vmem:[%s234] sm:$0x3]
        %v303 = vrot.slane %v301, 6
        %305 = vst.msk [vmem:[#allocation2 + $0x4] sm:$0xc] %vm232, %v303
        %v306 = vld [vmem:[%s237] sm:$0x3]
        %307 = vst.msk [vmem:[#allocation2 + $0xc] sm:$0x3] %vm225, %v306
        %s308 = scalar_lea.vmem %s222, 16
        %v309 = vld [vmem:[%s308] sm:$0x3]
        %v311 = vrot.slane %v309, 6
        %313 = vst.msk [vmem:[#allocation2 + $0xc] sm:$0xc] %vm232, %v311
        %v314 = vld [vmem:[%s227] sm:$0x7]
        %v316 = vshrl.u32 %v314, 16
        %v318 = vrot.slane %v316, 4
        %v319 = vshll.u32 %v314, 16
        %v321 = vrot.slane %v319, 5
        %v322 = vor.u32 %v318, %v321
        %v323 = vrot.slane %v322, 4
        %324 = vrot.lane.b32.xlu0 %v323, 64
        %v325 = vpop.permute.xlu0 %324
        %327 = vst.msk [vmem:[#allocation2 + $0x4] sm:$0x3] %vm256, %v325
        %v328 = vld [vmem:[%s234] sm:$0x7]
        %v330 = vshrl.u32 %v328, 16
        %v332 = vrot.slane %v330, 6
        %v333 = vshll.u32 %v328, 16
        %v335 = vrot.slane %v333, 7
        %v336 = vor.u32 %v332, %v335
        %337 = vrot.lane.b32.xlu0 %v336, 64
        %v338 = vpop.permute.xlu0 %337
        %340 = vst.msk [vmem:[#allocation2 + $0x4] sm:$0xc] %vm270, %v338
        %v341 = vld [vmem:[%s237] sm:$0x7]
        %v343 = vshrl.u32 %v341, 16
        %v345 = vrot.slane %v343, 4
        %v346 = vshll.u32 %v341, 16
        %v348 = vrot.slane %v346, 5
        %v349 = vor.u32 %v345, %v348
        %v350 = vrot.slane %v349, 4
        %351 = vrot.lane.b32.xlu0 %v350, 64
        %v352 = vpop.permute.xlu0 %351
        %354 = vst.msk [vmem:[#allocation2 + $0xc] sm:$0x3] %vm256, %v352
        %v355 = vld [vmem:[%s308] sm:$0x7]
        %v357 = vshrl.u32 %v355, 16
        %v359 = vrot.slane %v357, 6
        %v360 = vshll.u32 %v355, 16
        %v362 = vrot.slane %v360, 7
        %v363 = vor.u32 %v359, %v362
        %364 = vrot.lane.b32.xlu0 %v363, 64
        %v365 = vpop.permute.xlu0 %364
        %367 = vst.msk [vmem:[#allocation2 + $0xc] sm:$0xc] %vm270, %v365
        %v368 = vld [vmem:[#allocation2] sm:$0xff]
        %v369 = vld [vmem:[#allocation2 + $0x8] sm:$0xff]
        %vm370 = vcmask 1043456
        %vm371 = vcmask 130052
        %vm372 = vmor %vm371, %vm370
        %373 = vst.msk [vmem:[#allocation3] sm:$0xff] %vm372, 0
        %374 = vst.msk [vmem:[#allocation3 + $0x8] sm:$0xff] %vm372, 0
        %v375 = vld [vmem:[%s2] sm:$0x1]
        %v376 = vld [vmem:[%s1] sm:$0xf]
        %v377 = vld [vmem:[%s1 + $0x4] sm:$0xf]
        %v378 = vld [vmem:[%s1 + $0x8] sm:$0xf]
        %v379 = vld [vmem:[%s1 + $0xc] sm:$0xf]
        %v380 = vld [vmem:[%s1 + $0x10] sm:$0xf]
        %v381 = vld [vmem:[%s1 + $0x14] sm:$0xf]
        %v382 = vld [vmem:[%s1 + $0x18] sm:$0xf]
        %v383 = vld [vmem:[%s1 + $0x1c] sm:$0xf]
        %v384 = vld [vmem:[%s1 + $0x20] sm:$0xf]
        %v385 = vld [vmem:[%s1 + $0x24] sm:$0xf]
        %v386 = vld [vmem:[%s1 + $0x28] sm:$0xf]
        %v387 = vld [vmem:[%s1 + $0x2c] sm:$0xf]
        %v388 = vld [vmem:[%s1 + $0x30] sm:$0xf]
        %v389 = vld [vmem:[%s1 + $0x34] sm:$0xf]
        %v390 = vld [vmem:[%s1 + $0x38] sm:$0xf]
        %v391 = vld [vmem:[%s1 + $0x3c] sm:$0xf]
        %v392 = vld [vmem:[%s1 + $0x40] sm:$0xf]
        %v393 = vld [vmem:[%s1 + $0x44] sm:$0xf]
        %v394 = vld [vmem:[%s1 + $0x48] sm:$0xf]
        %v395 = vld [vmem:[%s1 + $0x4c] sm:$0xf]
        %v396 = vld [vmem:[%s1 + $0x50] sm:$0xf]
        %v397 = vld [vmem:[%s1 + $0x54] sm:$0xf]
        %v398 = vld [vmem:[%s1 + $0x58] sm:$0xf]
        %v399 = vld [vmem:[%s1 + $0x5c] sm:$0xf]
        %v400 = vld [vmem:[%s1 + $0x60] sm:$0xf]
        %v401 = vld [vmem:[%s1 + $0x64] sm:$0xf]
        %v402 = vld [vmem:[%s1 + $0x68] sm:$0xf]
        %v403 = vld [vmem:[%s1 + $0x6c] sm:$0xf]
        %v404 = vld [vmem:[%s1 + $0x70] sm:$0xf]
        %v405 = vld [vmem:[%s1 + $0x74] sm:$0xf]
        %v406 = vld [vmem:[%s1 + $0x78] sm:$0xf]
        %v407 = vld [vmem:[%s1 + $0x7c] sm:$0xf]
        %v409 = vperm.slane %v375, 0
        %v413 = vunpack.c.l.b16 %v368
        %v414 = vunpack.c.h.b16 %v368
        %v415 = vunpack.c.l.b16 %v369
        %v416 = vunpack.c.h.b16 %v369
        %v417 = vpack.c.b16 %v415, %v413
        %v418 = vpack.c.b16 %v416, %v414
        %v453 = vunpack.c.l.b16 %v376
        %v454 = vunpack.c.l.b16 %v377
        %v455 = vunpack.c.l.b16 %v378
        %v456 = vunpack.c.l.b16 %v379
        %v457 = vunpack.c.l.b16 %v380
        %v458 = vunpack.c.l.b16 %v381
        %v459 = vunpack.c.l.b16 %v382
        %v460 = vunpack.c.l.b16 %v383
        %v461 = vunpack.c.l.b16 %v384
        %v462 = vunpack.c.l.b16 %v385
        %v463 = vunpack.c.l.b16 %v386
        %v464 = vunpack.c.l.b16 %v387
        %v465 = vunpack.c.l.b16 %v388
        %v466 = vunpack.c.l.b16 %v389
        %v467 = vunpack.c.l.b16 %v390
        %v468 = vunpack.c.l.b16 %v391
        %v469 = vunpack.c.l.b16 %v392
        %v470 = vunpack.c.l.b16 %v393
        %v471 = vunpack.c.l.b16 %v394
        %v472 = vunpack.c.l.b16 %v395
        %v473 = vunpack.c.l.b16 %v396
        %v474 = vunpack.c.l.b16 %v397
        %v475 = vunpack.c.l.b16 %v398
        %v476 = vunpack.c.l.b16 %v399
        %v477 = vunpack.c.l.b16 %v400
        %v478 = vunpack.c.l.b16 %v401
        %v479 = vunpack.c.l.b16 %v402
        %v480 = vunpack.c.l.b16 %v403
        %v481 = vunpack.c.l.b16 %v404
        %v482 = vunpack.c.l.b16 %v405
        %v483 = vunpack.c.l.b16 %v406
        %v484 = vunpack.c.l.b16 %v407
        %v485 = vpack.c.b16 %v454, %v453
        %v486 = vpack.c.b16 %v456, %v455
        %v487 = vpack.c.b16 %v458, %v457
        %v488 = vpack.c.b16 %v460, %v459
        %v489 = vpack.c.b16 %v462, %v461
        %v490 = vpack.c.b16 %v464, %v463
        %v491 = vpack.c.b16 %v466, %v465
        %v492 = vpack.c.b16 %v468, %v467
        %v493 = vpack.c.b16 %v470, %v469
        %v494 = vpack.c.b16 %v472, %v471
        %v495 = vpack.c.b16 %v474, %v473
        %v496 = vpack.c.b16 %v476, %v475
        %v497 = vpack.c.b16 %v478, %v477
        %v498 = vpack.c.b16 %v480, %v479
        %v499 = vpack.c.b16 %v482, %v481
        %v500 = vpack.c.b16 %v484, %v483
        %517 = vmatpush.bf16.msra.mxu0 %v492
        %518 = vmatpush.bf16.msra.mxu0 %v491
        %519 = vmatpush.bf16.msra.mxu0 %v490
        %520 = vmatpush.bf16.msra.mxu0 %v489
        %521 = vmatpush.bf16.msra.mxu0 %v488
        %522 = vmatpush.bf16.msra.mxu0 %v487
        %523 = vmatpush.bf16.msra.mxu0 %v486
        %524 = vmatpush.bf16.msra.mxu0 %v485
        %525 = vmatmul.bf16.gmra.mxu0 %v417
        %v526 = vpop.f32.mrf.mxu0
        %v527 = vadd.f32 %v409, %v526
        %v528 = vpop.f32.mrf.mxu0
        %v529 = vadd.f32 %v409, %v528
        %530 = vdwg.mxu0
        %531 = vmatpush.bf16.msra.mxu0 %v500
        %532 = vmatpush.bf16.msra.mxu0 %v499
        %533 = vmatpush.bf16.msra.mxu0 %v498
        %534 = vmatpush.bf16.msra.mxu0 %v497
        %535 = vmatpush.bf16.msra.mxu0 %v496
        %536 = vmatpush.bf16.msra.mxu0 %v495
        %537 = vmatpush.bf16.msra.mxu0 %v494
        %538 = vmatpush.bf16.msra.mxu0 %v493
        %539 = vmatmul.bf16.gmra.mxu0 %v418
        %v540 = vpop.f32.mrf.mxu0
        %v541 = vadd.f32 %v527, %v540
        %v542 = vpop.f32.mrf.mxu0
        %v543 = vadd.f32 %v529, %v542
        %544 = vdwg.mxu0
        %v545 = vmul.f32 %v541, 0.5
        %v546 = vmul.f32 %v543, 0.5
        %v547 = vmul.f32 %v541, 0.70710677
        %v548 = vmul.f32 %v543, 0.70710677
        %v549 = vand.u32 2147483647, %v547
        %v550 = vand.u32 2147483647, %v548
        %v551 = vmul.f32 %v549, 0.3275911
        %v552 = vmul.f32 %v550, 0.3275911
        %v553 = vadd.f32 %v551, 1.0
        %v554 = vadd.f32 %v552, 1.0
        %v555 = vrcp.pop %v553
        %v556 = vmul.f32 %v553, %v555
        %v557 = vsub.f32 1.0, %v556
        %v558 = vmul.f32 %v555, %v557
        %v559 = vadd.f32 %v555, %v558
        %vm560 = vweird.f32 %v553
        %vm561 = vweird.f32 %v555
        %vm562 = vmor %vm560, %vm561
        %v563 = vsel %vm562, %v555, %v559
        %v564 = vand.u32 2147483647, %v553
        %vm565 = vcmp.eq.f32.partialorder %v564, 8.507059e+37
        %v566 = vand.u32 %v553, 2147483648
        %v567 = vor.u32 1.1754944e-38, %v566
        %v568 = vsel %vm565, %v567, %v563
        %v569 = vmul.f32 1.0, %v568
        %v570 = vrcp.pop %v554
        %v571 = vmul.f32 %v554, %v570
        %v572 = vsub.f32 1.0, %v571
        %v573 = vmul.f32 %v570, %v572
        %v574 = vadd.f32 %v570, %v573
        %vm575 = vweird.f32 %v554
        %vm576 = vweird.f32 %v570
        %vm577 = vmor %vm575, %vm576
        %v578 = vsel %vm577, %v570, %v574
        %v579 = vand.u32 2147483647, %v554
        %vm580 = vcmp.eq.f32.partialorder %v579, 8.507059e+37
        %v581 = vand.u32 %v554, 2147483648
        %v582 = vor.u32 1.1754944e-38, %v581
        %v583 = vsel %vm580, %v582, %v578
        %v584 = vmul.f32 1.0, %v583
        %v585 = vmul.f32 %v569, 1.0614054
        %v586 = vmul.f32 %v584, 1.0614054
        %v587 = vadd.f32 %v585, -1.4531521
        %v588 = vadd.f32 %v586, -1.4531521
        %v589 = vmul.f32 %v587, %v569
        %v590 = vmul.f32 %v588, %v584
        %v591 = vadd.f32 %v589, 1.4214138
        %v592 = vadd.f32 %v590, 1.4214138
        %v593 = vmul.f32 %v591, %v569
        %v594 = vmul.f32 %v592, %v584
        %v595 = vadd.f32 %v593, -0.28449672
        %v596 = vadd.f32 %v594, -0.28449672
        %v597 = vmul.f32 %v595, %v569
        %v598 = vmul.f32 %v596, %v584
        %v599 = vadd.f32 %v597, 0.2548296
        %v600 = vadd.f32 %v598, 0.2548296
        %v601 = vmul.f32 %v599, %v569
        %v602 = vmul.f32 %v600, %v584
        %v603 = vsub.f32 0.0, %v549
        %v604 = vsub.f32 0.0, %v550
        %v605 = vmul.f32 %v603, %v549
        %v606 = vmul.f32 %v604, %v550
        %v607 = vmul.f32 %v605, 1.442695
        %v608 = vpow.pop %v607
        %v609 = vmul.f32 %v606, 1.442695
        %v610 = vpow.pop %v609
        %v611 = vmul.f32 %v601, %v608
        %v612 = vmul.f32 %v602, %v610
        %v613 = vsub.f32 1.0, %v611
        %v614 = vsub.f32 1.0, %v612
        %vm615 = vcmp.ge.f32.partialorder %v547, 0.0
        %vm616 = vcmp.ge.f32.partialorder %v548, 0.0
        %v617 = vsub.f32 0.0, %v613
        %v618 = vsub.f32 0.0, %v614
        %v619 = vsel %vm615, %v613, %v617
        %v620 = vsel %vm616, %v614, %v618
        %v621 = vadd.f32 %v619, 1.0
        %v622 = vadd.f32 %v620, 1.0
        %v623 = vmul.f32 %v545, %v621
        %v624 = vmul.f32 %v546, %v622
        %v625 = vpack.c.bf16 %v623, %v623
        %v626 = vpack.c.bf16 %v624, %v624
        %628 = vrot.lane.b32.xlu0 %v625, 64
        %v629 = vpop.permute.xlu0 %628
        %vm631 = vcmask 648704
        %632 = vst.msk [vmem:[#allocation3] sm:$0x3] %vm631, %v629
        %vm633 = vcmask 650754
        %634 = vst.msk [vmem:[#allocation3] sm:$0xc] %vm633, %v629
        %636 = vrot.lane.b32.xlu0 %v626, 64
        %v637 = vpop.permute.xlu0 %636
        %639 = vst.msk [vmem:[#allocation3 + $0x8] sm:$0x3] %vm631, %v637
        %640 = vst.msk [vmem:[#allocation3 + $0x8] sm:$0xc] %vm633, %v637
        %s641 = scalar_lea.vmem %s1, 128
        %v642 = vld [vmem:[%s641] sm:$0xf]
        %v643 = vld [vmem:[%s641 + $0x4] sm:$0xf]
        %v644 = vld [vmem:[%s641 + $0x8] sm:$0xf]
        %v645 = vld [vmem:[%s641 + $0xc] sm:$0xf]
        %v646 = vld [vmem:[%s641 + $0x10] sm:$0xf]
        %v647 = vld [vmem:[%s641 + $0x14] sm:$0xf]
        %v648 = vld [vmem:[%s641 + $0x18] sm:$0xf]
        %v649 = vld [vmem:[%s641 + $0x1c] sm:$0xf]
        %v650 = vld [vmem:[%s641 + $0x20] sm:$0xf]
        %v651 = vld [vmem:[%s641 + $0x24] sm:$0xf]
        %v652 = vld [vmem:[%s641 + $0x28] sm:$0xf]
        %v653 = vld [vmem:[%s641 + $0x2c] sm:$0xf]
        %v654 = vld [vmem:[%s641 + $0x30] sm:$0xf]
        %v655 = vld [vmem:[%s641 + $0x34] sm:$0xf]
        %v656 = vld [vmem:[%s641 + $0x38] sm:$0xf]
        %v657 = vld [vmem:[%s641 + $0x3c] sm:$0xf]
        %v658 = vld [vmem:[%s641 + $0x40] sm:$0xf]
        %v659 = vld [vmem:[%s641 + $0x44] sm:$0xf]
        %v660 = vld [vmem:[%s641 + $0x48] sm:$0xf]
        %v661 = vld [vmem:[%s641 + $0x4c] sm:$0xf]
        %v662 = vld [vmem:[%s641 + $0x50] sm:$0xf]
        %v663 = vld [vmem:[%s641 + $0x54] sm:$0xf]
        %v664 = vld [vmem:[%s641 + $0x58] sm:$0xf]
        %v665 = vld [vmem:[%s641 + $0x5c] sm:$0xf]
        %v666 = vld [vmem:[%s641 + $0x60] sm:$0xf]
        %v667 = vld [vmem:[%s641 + $0x64] sm:$0xf]
        %v668 = vld [vmem:[%s641 + $0x68] sm:$0xf]
        %v669 = vld [vmem:[%s641 + $0x6c] sm:$0xf]
        %v670 = vld [vmem:[%s641 + $0x70] sm:$0xf]
        %v671 = vld [vmem:[%s641 + $0x74] sm:$0xf]
        %v672 = vld [vmem:[%s641 + $0x78] sm:$0xf]
        %v673 = vld [vmem:[%s641 + $0x7c] sm:$0xf]
        %v706 = vunpack.c.l.b16 %v642
        %v707 = vunpack.c.l.b16 %v643
        %v708 = vunpack.c.l.b16 %v644
        %v709 = vunpack.c.l.b16 %v645
        %v710 = vunpack.c.l.b16 %v646
        %v711 = vunpack.c.l.b16 %v647
        %v712 = vunpack.c.l.b16 %v648
        %v713 = vunpack.c.l.b16 %v649
        %v714 = vunpack.c.l.b16 %v650
        %v715 = vunpack.c.l.b16 %v651
        %v716 = vunpack.c.l.b16 %v652
        %v717 = vunpack.c.l.b16 %v653
        %v718 = vunpack.c.l.b16 %v654
        %v719 = vunpack.c.l.b16 %v655
        %v720 = vunpack.c.l.b16 %v656
        %v721 = vunpack.c.l.b16 %v657
        %v722 = vunpack.c.l.b16 %v658
        %v723 = vunpack.c.l.b16 %v659
        %v724 = vunpack.c.l.b16 %v660
        %v725 = vunpack.c.l.b16 %v661
        %v726 = vunpack.c.l.b16 %v662
        %v727 = vunpack.c.l.b16 %v663
        %v728 = vunpack.c.l.b16 %v664
        %v729 = vunpack.c.l.b16 %v665
        %v730 = vunpack.c.l.b16 %v666
        %v731 = vunpack.c.l.b16 %v667
        %v732 = vunpack.c.l.b16 %v668
        %v733 = vunpack.c.l.b16 %v669
        %v734 = vunpack.c.l.b16 %v670
        %v735 = vunpack.c.l.b16 %v671
        %v736 = vunpack.c.l.b16 %v672
        %v737 = vunpack.c.l.b16 %v673
        %v738 = vpack.c.b16 %v707, %v706
        %v739 = vpack.c.b16 %v709, %v708
        %v740 = vpack.c.b16 %v711, %v710
        %v741 = vpack.c.b16 %v713, %v712
        %v742 = vpack.c.b16 %v715, %v714
        %v743 = vpack.c.b16 %v717, %v716
        %v744 = vpack.c.b16 %v719, %v718
        %v745 = vpack.c.b16 %v721, %v720
        %v746 = vpack.c.b16 %v723, %v722
        %v747 = vpack.c.b16 %v725, %v724
        %v748 = vpack.c.b16 %v727, %v726
        %v749 = vpack.c.b16 %v729, %v728
        %v750 = vpack.c.b16 %v731, %v730
        %v751 = vpack.c.b16 %v733, %v732
        %v752 = vpack.c.b16 %v735, %v734
        %v753 = vpack.c.b16 %v737, %v736
        %770 = vmatpush.bf16.msra.mxu0 %v745
        %771 = vmatpush.bf16.msra.mxu0 %v744
        %772 = vmatpush.bf16.msra.mxu0 %v743
        %773 = vmatpush.bf16.msra.mxu0 %v742
        %774 = vmatpush.bf16.msra.mxu0 %v741
        %775 = vmatpush.bf16.msra.mxu0 %v740
        %776 = vmatpush.bf16.msra.mxu0 %v739
        %777 = vmatpush.bf16.msra.mxu0 %v738
        %778 = vmatmul.bf16.gmra.mxu0 %v417
        %v779 = vpop.f32.mrf.mxu0
        %v780 = vadd.f32 %v409, %v779
        %v781 = vpop.f32.mrf.mxu0
        %v782 = vadd.f32 %v409, %v781
        %783 = vdwg.mxu0
        %784 = vmatpush.bf16.msra.mxu0 %v753
        %785 = vmatpush.bf16.msra.mxu0 %v752
        %786 = vmatpush.bf16.msra.mxu0 %v751
        %787 = vmatpush.bf16.msra.mxu0 %v750
        %788 = vmatpush.bf16.msra.mxu0 %v749
        %789 = vmatpush.bf16.msra.mxu0 %v748
        %790 = vmatpush.bf16.msra.mxu0 %v747
        %791 = vmatpush.bf16.msra.mxu0 %v746
        %792 = vmatmul.bf16.gmra.mxu0 %v418
        %v793 = vpop.f32.mrf.mxu0
        %v794 = vadd.f32 %v780, %v793
        %v795 = vpop.f32.mrf.mxu0
        %v796 = vadd.f32 %v782, %v795
        %797 = vdwg.mxu0
        %v798 = vmul.f32 %v794, 0.5
        %v799 = vmul.f32 %v796, 0.5
        %v800 = vmul.f32 %v794, 0.70710677
        %v801 = vmul.f32 %v796, 0.70710677
        %v802 = vand.u32 2147483647, %v800
        %v803 = vand.u32 2147483647, %v801
        %v804 = vmul.f32 %v802, 0.3275911
        %v805 = vmul.f32 %v803, 0.3275911
        %v806 = vadd.f32 %v804, 1.0
        %v807 = vadd.f32 %v805, 1.0
        %v808 = vrcp.pop %v806
        %v809 = vmul.f32 %v806, %v808
        %v810 = vsub.f32 1.0, %v809
        %v811 = vmul.f32 %v808, %v810
        %v812 = vadd.f32 %v808, %v811
        %vm813 = vweird.f32 %v806
        %vm814 = vweird.f32 %v808
        %vm815 = vmor %vm813, %vm814
        %v816 = vsel %vm815, %v808, %v812
        %v817 = vand.u32 2147483647, %v806
        %vm818 = vcmp.eq.f32.partialorder %v817, 8.507059e+37
        %v819 = vand.u32 %v806, 2147483648
        %v820 = vor.u32 1.1754944e-38, %v819
        %v821 = vsel %vm818, %v820, %v816
        %v822 = vmul.f32 1.0, %v821
        %v823 = vrcp.pop %v807
        %v824 = vmul.f32 %v807, %v823
        %v825 = vsub.f32 1.0, %v824
        %v826 = vmul.f32 %v823, %v825
        %v827 = vadd.f32 %v823, %v826
        %vm828 = vweird.f32 %v807
        %vm829 = vweird.f32 %v823
        %vm830 = vmor %vm828, %vm829
        %v831 = vsel %vm830, %v823, %v827
        %v832 = vand.u32 2147483647, %v807
        %vm833 = vcmp.eq.f32.partialorder %v832, 8.507059e+37
        %v834 = vand.u32 %v807, 2147483648
        %v835 = vor.u32 1.1754944e-38, %v834
        %v836 = vsel %vm833, %v835, %v831
        %v837 = vmul.f32 1.0, %v836
        %v838 = vmul.f32 %v822, 1.0614054
        %v839 = vmul.f32 %v837, 1.0614054
        %v840 = vadd.f32 %v838, -1.4531521
        %v841 = vadd.f32 %v839, -1.4531521
        %v842 = vmul.f32 %v840, %v822
        %v843 = vmul.f32 %v841, %v837
        %v844 = vadd.f32 %v842, 1.4214138
        %v845 = vadd.f32 %v843, 1.4214138
        %v846 = vmul.f32 %v844, %v822
        %v847 = vmul.f32 %v845, %v837
        %v848 = vadd.f32 %v846, -0.28449672
        %v849 = vadd.f32 %v847, -0.28449672
        %v850 = vmul.f32 %v848, %v822
        %v851 = vmul.f32 %v849, %v837
        %v852 = vadd.f32 %v850, 0.2548296
        %v853 = vadd.f32 %v851, 0.2548296
        %v854 = vmul.f32 %v852, %v822
        %v855 = vmul.f32 %v853, %v837
        %v856 = vsub.f32 0.0, %v802
        %v857 = vsub.f32 0.0, %v803
        %v858 = vmul.f32 %v856, %v802
        %v859 = vmul.f32 %v857, %v803
        %v860 = vmul.f32 %v858, 1.442695
        %v861 = vpow.pop %v860
        %v862 = vmul.f32 %v859, 1.442695
        %v863 = vpow.pop %v862
        %v864 = vmul.f32 %v854, %v861
        %v865 = vmul.f32 %v855, %v863
        %v866 = vsub.f32 1.0, %v864
        %v867 = vsub.f32 1.0, %v865
        %vm868 = vcmp.ge.f32.partialorder %v800, 0.0
        %vm869 = vcmp.ge.f32.partialorder %v801, 0.0
        %v870 = vsub.f32 0.0, %v866
        %v871 = vsub.f32 0.0, %v867
        %v872 = vsel %vm868, %v866, %v870
        %v873 = vsel %vm869, %v867, %v871
        %v874 = vadd.f32 %v872, 1.0
        %v875 = vadd.f32 %v873, 1.0
        %v876 = vmul.f32 %v798, %v874
        %v877 = vmul.f32 %v799, %v875
        %v878 = vpack.c.bf16 %v876, %v876
        %v879 = vpack.c.bf16 %v877, %v877
        %v881 = vshrl.u32 %v878, 16
        %v883 = vrot.slane %v881, 7
        %v884 = vshll.u32 %v878, 16
        %v886 = vor.u32 %v883, %v884
        %887 = vrot.lane.b32.xlu0 %v886, 48
        %v888 = vpop.permute.xlu0 %887
        %vm890 = vcmask 517504
        %vm891 = vsmask.f32 7938
        %vm892 = vmand %vm890, %vm891
        %v893 = vld [vmem:[#allocation3] sm:$0x3]
        %v894 = vsel %vm892, %v888, %v893
        %895 = vst [vmem:[#allocation3] sm:$0x3] %v894
        %vm896 = vcmask 519554
        %vm897 = vsmask.f32 7946
        %vm898 = vmand %vm896, %vm897
        %v899 = vld [vmem:[#allocation3] sm:$0xc]
        %v900 = vsel %vm898, %v888, %v899
        %901 = vst [vmem:[#allocation3] sm:$0xc] %v900
        %v903 = vshrl.u32 %v879, 16
        %v905 = vrot.slane %v903, 7
        %v906 = vshll.u32 %v879, 16
        %v908 = vor.u32 %v905, %v906
        %909 = vrot.lane.b32.xlu0 %v908, 48
        %v910 = vpop.permute.xlu0 %909
        %v912 = vld [vmem:[#allocation3 + $0x8] sm:$0x3]
        %v913 = vsel %vm892, %v910, %v912
        %914 = vst [vmem:[#allocation3 + $0x8] sm:$0x3] %v913
        %v915 = vld [vmem:[#allocation3 + $0x8] sm:$0xc]
        %v916 = vsel %vm898, %v910, %v915
        %917 = vst [vmem:[#allocation3 + $0x8] sm:$0xc] %v916
        %919 = vrot.lane.b32.xlu0 %v878, 80
        %v920 = vpop.permute.xlu0 %919
        %vm922 = vcmask 779904
        %923 = vst.msk [vmem:[#allocation3] sm:$0x3] %vm922, %v920
        %vm924 = vcmask 781954
        %925 = vst.msk [vmem:[#allocation3] sm:$0xc] %vm924, %v920
        %927 = vrot.lane.b32.xlu0 %v879, 80
        %v928 = vpop.permute.xlu0 %927
        %930 = vst.msk [vmem:[#allocation3 + $0x8] sm:$0x3] %vm922, %v928
        %931 = vst.msk [vmem:[#allocation3 + $0x8] sm:$0xc] %vm924, %v928
        %s932 = scalar_lea.vmem %s1, 256
        %v933 = vld [vmem:[%s932] sm:$0xf]
        %v934 = vld [vmem:[%s932 + $0x4] sm:$0xf]
        %v935 = vld [vmem:[%s932 + $0x8] sm:$0xf]
        %v936 = vld [vmem:[%s932 + $0xc] sm:$0xf]
        %v937 = vld [vmem:[%s932 + $0x10] sm:$0xf]
        %v938 = vld [vmem:[%s932 + $0x14] sm:$0xf]
        %v939 = vld [vmem:[%s932 + $0x18] sm:$0xf]
        %v940 = vld [vmem:[%s932 + $0x1c] sm:$0xf]
        %v941 = vld [vmem:[%s932 + $0x20] sm:$0xf]
        %v942 = vld [vmem:[%s932 + $0x24] sm:$0xf]
        %v943 = vld [vmem:[%s932 + $0x28] sm:$0xf]
        %v944 = vld [vmem:[%s932 + $0x2c] sm:$0xf]
        %v945 = vld [vmem:[%s932 + $0x30] sm:$0xf]
        %v946 = vld [vmem:[%s932 + $0x34] sm:$0xf]
        %v947 = vld [vmem:[%s932 + $0x38] sm:$0xf]
        %v948 = vld [vmem:[%s932 + $0x3c] sm:$0xf]
        %v949 = vld [vmem:[%s932 + $0x40] sm:$0xf]
        %v950 = vld [vmem:[%s932 + $0x44] sm:$0xf]
        %v951 = vld [vmem:[%s932 + $0x48] sm:$0xf]
        %v952 = vld [vmem:[%s932 + $0x4c] sm:$0xf]
        %v953 = vld [vmem:[%s932 + $0x50] sm:$0xf]
        %v954 = vld [vmem:[%s932 + $0x54] sm:$0xf]
        %v955 = vld [vmem:[%s932 + $0x58] sm:$0xf]
        %v956 = vld [vmem:[%s932 + $0x5c] sm:$0xf]
        %v957 = vld [vmem:[%s932 + $0x60] sm:$0xf]
        %v958 = vld [vmem:[%s932 + $0x64] sm:$0xf]
        %v959 = vld [vmem:[%s932 + $0x68] sm:$0xf]
        %v960 = vld [vmem:[%s932 + $0x6c] sm:$0xf]
        %v961 = vld [vmem:[%s932 + $0x70] sm:$0xf]
        %v962 = vld [vmem:[%s932 + $0x74] sm:$0xf]
        %v963 = vld [vmem:[%s932 + $0x78] sm:$0xf]
        %v964 = vld [vmem:[%s932 + $0x7c] sm:$0xf]
        %v997 = vunpack.c.l.b16 %v933
        %v998 = vunpack.c.l.b16 %v934
        %v999 = vunpack.c.l.b16 %v935
        %v1000 = vunpack.c.l.b16 %v936
        %v1001 = vunpack.c.l.b16 %v937
        %v1002 = vunpack.c.l.b16 %v938
        %v1003 = vunpack.c.l.b16 %v939
        %v1004 = vunpack.c.l.b16 %v940
        %v1005 = vunpack.c.l.b16 %v941
        %v1006 = vunpack.c.l.b16 %v942
        %v1007 = vunpack.c.l.b16 %v943
        %v1008 = vunpack.c.l.b16 %v944
        %v1009 = vunpack.c.l.b16 %v945
        %v1010 = vunpack.c.l.b16 %v946
        %v1011 = vunpack.c.l.b16 %v947
        %v1012 = vunpack.c.l.b16 %v948
        %v1013 = vunpack.c.l.b16 %v949
        %v1014 = vunpack.c.l.b16 %v950
        %v1015 = vunpack.c.l.b16 %v951
        %v1016 = vunpack.c.l.b16 %v952
        %v1017 = vunpack.c.l.b16 %v953
        %v1018 = vunpack.c.l.b16 %v954
        %v1019 = vunpack.c.l.b16 %v955
        %v1020 = vunpack.c.l.b16 %v956
        %v1021 = vunpack.c.l.b16 %v957
        %v1022 = vunpack.c.l.b16 %v958
        %v1023 = vunpack.c.l.b16 %v959
        %v1024 = vunpack.c.l.b16 %v960
        %v1025 = vunpack.c.l.b16 %v961
        %v1026 = vunpack.c.l.b16 %v962
        %v1027 = vunpack.c.l.b16 %v963
        %v1028 = vunpack.c.l.b16 %v964
        %v1029 = vpack.c.b16 %v998, %v997
        %v1030 = vpack.c.b16 %v1000, %v999
        %v1031 = vpack.c.b16 %v1002, %v1001
        %v1032 = vpack.c.b16 %v1004, %v1003
        %v1033 = vpack.c.b16 %v1006, %v1005
        %v1034 = vpack.c.b16 %v1008, %v1007
        %v1035 = vpack.c.b16 %v1010, %v1009
        %v1036 = vpack.c.b16 %v1012, %v1011
        %v1037 = vpack.c.b16 %v1014, %v1013
        %v1038 = vpack.c.b16 %v1016, %v1015
        %v1039 = vpack.c.b16 %v1018, %v1017
        %v1040 = vpack.c.b16 %v1020, %v1019
        %v1041 = vpack.c.b16 %v1022, %v1021
        %v1042 = vpack.c.b16 %v1024, %v1023
        %v1043 = vpack.c.b16 %v1026, %v1025
        %v1044 = vpack.c.b16 %v1028, %v1027
        %1061 = vmatpush.bf16.msra.mxu0 %v1036
        %1062 = vmatpush.bf16.msra.mxu0 %v1035
        %1063 = vmatpush.bf16.msra.mxu0 %v1034
        %1064 = vmatpush.bf16.msra.mxu0 %v1033
        %1065 = vmatpush.bf16.msra.mxu0 %v1032
        %1066 = vmatpush.bf16.msra.mxu0 %v1031
        %1067 = vmatpush.bf16.msra.mxu0 %v1030
        %1068 = vmatpush.bf16.msra.mxu0 %v1029
        %1069 = vmatmul.bf16.gmra.mxu0 %v417
        %v1070 = vpop.f32.mrf.mxu0
        %v1071 = vadd.f32 %v409, %v1070
        %v1072 = vpop.f32.mrf.mxu0
        %v1073 = vadd.f32 %v409, %v1072
        %1074 = vdwg.mxu0
        %1075 = vmatpush.bf16.msra.mxu0 %v1044
        %1076 = vmatpush.bf16.msra.mxu0 %v1043
        %1077 = vmatpush.bf16.msra.mxu0 %v1042
        %1078 = vmatpush.bf16.msra.mxu0 %v1041
        %1079 = vmatpush.bf16.msra.mxu0 %v1040
        %1080 = vmatpush.bf16.msra.mxu0 %v1039
        %1081 = vmatpush.bf16.msra.mxu0 %v1038
        %1082 = vmatpush.bf16.msra.mxu0 %v1037
        %1083 = vmatmul.bf16.gmra.mxu0 %v418
        %v1084 = vpop.f32.mrf.mxu0
        %v1085 = vadd.f32 %v1071, %v1084
        %v1086 = vpop.f32.mrf.mxu0
        %v1087 = vadd.f32 %v1073, %v1086
        %1088 = vdwg.mxu0
        %v1089 = vmul.f32 %v1085, 0.5
        %v1090 = vmul.f32 %v1087, 0.5
        %v1091 = vmul.f32 %v1085, 0.70710677
        %v1092 = vmul.f32 %v1087, 0.70710677
        %v1093 = vand.u32 2147483647, %v1091
        %v1094 = vand.u32 2147483647, %v1092
        %v1095 = vmul.f32 %v1093, 0.3275911
        %v1096 = vmul.f32 %v1094, 0.3275911
        %v1097 = vadd.f32 %v1095, 1.0
        %v1098 = vadd.f32 %v1096, 1.0
        %v1099 = vrcp.pop %v1097
        %v1100 = vmul.f32 %v1097, %v1099
        %v1101 = vsub.f32 1.0, %v1100
        %v1102 = vmul.f32 %v1099, %v1101
        %v1103 = vadd.f32 %v1099, %v1102
        %vm1104 = vweird.f32 %v1097
        %vm1105 = vweird.f32 %v1099
        %vm1106 = vmor %vm1104, %vm1105
        %v1107 = vsel %vm1106, %v1099, %v1103
        %v1108 = vand.u32 2147483647, %v1097
        %vm1109 = vcmp.eq.f32.partialorder %v1108, 8.507059e+37
        %v1110 = vand.u32 %v1097, 2147483648
        %v1111 = vor.u32 1.1754944e-38, %v1110
        %v1112 = vsel %vm1109, %v1111, %v1107
        %v1113 = vmul.f32 1.0, %v1112
        %v1114 = vrcp.pop %v1098
        %v1115 = vmul.f32 %v1098, %v1114
        %v1116 = vsub.f32 1.0, %v1115
        %v1117 = vmul.f32 %v1114, %v1116
        %v1118 = vadd.f32 %v1114, %v1117
        %vm1119 = vweird.f32 %v1098
        %vm1120 = vweird.f32 %v1114
        %vm1121 = vmor %vm1119, %vm1120
        %v1122 = vsel %vm1121, %v1114, %v1118
        %v1123 = vand.u32 2147483647, %v1098
        %vm1124 = vcmp.eq.f32.partialorder %v1123, 8.507059e+37
        %v1125 = vand.u32 %v1098, 2147483648
        %v1126 = vor.u32 1.1754944e-38, %v1125
        %v1127 = vsel %vm1124, %v1126, %v1122
        %v1128 = vmul.f32 1.0, %v1127
        %v1129 = vmul.f32 %v1113, 1.0614054
        %v1130 = vmul.f32 %v1128, 1.0614054
        %v1131 = vadd.f32 %v1129, -1.4531521
        %v1132 = vadd.f32 %v1130, -1.4531521
        %v1133 = vmul.f32 %v1131, %v1113
        %v1134 = vmul.f32 %v1132, %v1128
        %v1135 = vadd.f32 %v1133, 1.4214138
        %v1136 = vadd.f32 %v1134, 1.4214138
        %v1137 = vmul.f32 %v1135, %v1113
        %v1138 = vmul.f32 %v1136, %v1128
        %v1139 = vadd.f32 %v1137, -0.28449672
        %v1140 = vadd.f32 %v1138, -0.28449672
        %v1141 = vmul.f32 %v1139, %v1113
        %v1142 = vmul.f32 %v1140, %v1128
        %v1143 = vadd.f32 %v1141, 0.2548296
        %v1144 = vadd.f32 %v1142, 0.2548296
        %v1145 = vmul.f32 %v1143, %v1113
        %v1146 = vmul.f32 %v1144, %v1128
        %v1147 = vsub.f32 0.0, %v1093
        %v1148 = vsub.f32 0.0, %v1094
        %v1149 = vmul.f32 %v1147, %v1093
        %v1150 = vmul.f32 %v1148, %v1094
        %v1151 = vmul.f32 %v1149, 1.442695
        %v1152 = vpow.pop %v1151
        %v1153 = vmul.f32 %v1150, 1.442695
        %v1154 = vpow.pop %v1153
        %v1155 = vmul.f32 %v1145, %v1152
        %v1156 = vmul.f32 %v1146, %v1154
        %v1157 = vsub.f32 1.0, %v1155
        %v1158 = vsub.f32 1.0, %v1156
        %vm1159 = vcmp.ge.f32.partialorder %v1091, 0.0
        %vm1160 = vcmp.ge.f32.partialorder %v1092, 0.0
        %v1161 = vsub.f32 0.0, %v1157
        %v1162 = vsub.f32 0.0, %v1158
        %v1163 = vsel %vm1159, %v1157, %v1161
        %v1164 = vsel %vm1160, %v1158, %v1162
        %v1165 = vadd.f32 %v1163, 1.0
        %v1166 = vadd.f32 %v1164, 1.0
        %v1167 = vmul.f32 %v1089, %v1165
        %v1168 = vmul.f32 %v1090, %v1166
        %v1169 = vpack.c.bf16 %v1167, %v1167
        %v1170 = vpack.c.bf16 %v1168, %v1168
        %v1172 = vrot.slane %v1169, 6
        %1173 = vrot.lane.b32.xlu0 %v1172, 16
        %v1174 = vpop.permute.xlu0 %1173
        %vm1176 = vcmask 257154
        %1177 = vst.msk [vmem:[#allocation3] sm:$0xc] %vm1176, %v1174
        %v1178 = vrot.slane %v1172, 4
        %1179 = vrot.lane.b32.xlu0 %v1178, 16
        %v1180 = vpop.permute.xlu0 %1179
        %vm1182 = vcmask 255104
        %1183 = vst.msk [vmem:[#allocation3 + $0x8] sm:$0x3] %vm1182, %v1180
        %v1185 = vrot.slane %v1170, 6
        %1186 = vrot.lane.b32.xlu0 %v1185, 16
        %v1187 = vpop.permute.xlu0 %1186
        %1189 = vst.msk [vmem:[#allocation3 + $0x8] sm:$0xc] %vm1176, %v1187
        %1190 = vrot.lane.b32.xlu0 %v1169, 112
        %v1191 = vpop.permute.xlu0 %1190
        %vm1193 = vcmask 1042304
        %1194 = vst.msk [vmem:[#allocation3] sm:$0x3] %vm1193, %v1191
        %vm1195 = vcmask 1044354
        %1196 = vst.msk [vmem:[#allocation3] sm:$0xc] %vm1195, %v1191
        %1197 = vrot.lane.b32.xlu0 %v1170, 112
        %v1198 = vpop.permute.xlu0 %1197
        %1200 = vst.msk [vmem:[#allocation3 + $0x8] sm:$0x3] %vm1193, %v1198
        %1201 = vst.msk [vmem:[#allocation3 + $0x8] sm:$0xc] %vm1195, %v1198
        %s1202 = scalar_lea.vmem %s1, 384
        %v1203 = vld [vmem:[%s1202] sm:$0xf]
        %v1204 = vld [vmem:[%s1202 + $0x4] sm:$0xf]
        %v1205 = vld [vmem:[%s1202 + $0x8] sm:$0xf]
        %v1206 = vld [vmem:[%s1202 + $0xc] sm:$0xf]
        %v1207 = vld [vmem:[%s1202 + $0x10] sm:$0xf]
        %v1208 = vld [vmem:[%s1202 + $0x14] sm:$0xf]
        %v1209 = vld [vmem:[%s1202 + $0x18] sm:$0xf]
        %v1210 = vld [vmem:[%s1202 + $0x1c] sm:$0xf]
        %v1211 = vld [vmem:[%s1202 + $0x20] sm:$0xf]
        %v1212 = vld [vmem:[%s1202 + $0x24] sm:$0xf]
        %v1213 = vld [vmem:[%s1202 + $0x28] sm:$0xf]
        %v1214 = vld [vmem:[%s1202 + $0x2c] sm:$0xf]
        %v1215 = vld [vmem:[%s1202 + $0x30] sm:$0xf]
        %v1216 = vld [vmem:[%s1202 + $0x34] sm:$0xf]
        %v1217 = vld [vmem:[%s1202 + $0x38] sm:$0xf]
        %v1218 = vld [vmem:[%s1202 + $0x3c] sm:$0xf]
        %v1219 = vld [vmem:[%s1202 + $0x40] sm:$0xf]
        %v1220 = vld [vmem:[%s1202 + $0x44] sm:$0xf]
        %v1221 = vld [vmem:[%s1202 + $0x48] sm:$0xf]
        %v1222 = vld [vmem:[%s1202 + $0x4c] sm:$0xf]
        %v1223 = vld [vmem:[%s1202 + $0x50] sm:$0xf]
        %v1224 = vld [vmem:[%s1202 + $0x54] sm:$0xf]
        %v1225 = vld [vmem:[%s1202 + $0x58] sm:$0xf]
        %v1226 = vld [vmem:[%s1202 + $0x5c] sm:$0xf]
        %v1227 = vld [vmem:[%s1202 + $0x60] sm:$0xf]
        %v1228 = vld [vmem:[%s1202 + $0x64] sm:$0xf]
        %v1229 = vld [vmem:[%s1202 + $0x68] sm:$0xf]
        %v1230 = vld [vmem:[%s1202 + $0x6c] sm:$0xf]
        %v1231 = vld [vmem:[%s1202 + $0x70] sm:$0xf]
        %v1232 = vld [vmem:[%s1202 + $0x74] sm:$0xf]
        %v1233 = vld [vmem:[%s1202 + $0x78] sm:$0xf]
        %v1234 = vld [vmem:[%s1202 + $0x7c] sm:$0xf]
        %v1267 = vunpack.c.l.b16 %v1203
        %v1268 = vunpack.c.l.b16 %v1204
        %v1269 = vunpack.c.l.b16 %v1205
        %v1270 = vunpack.c.l.b16 %v1206
        %v1271 = vunpack.c.l.b16 %v1207
        %v1272 = vunpack.c.l.b16 %v1208
        %v1273 = vunpack.c.l.b16 %v1209
        %v1274 = vunpack.c.l.b16 %v1210
        %v1275 = vunpack.c.l.b16 %v1211
        %v1276 = vunpack.c.l.b16 %v1212
        %v1277 = vunpack.c.l.b16 %v1213
        %v1278 = vunpack.c.l.b16 %v1214
        %v1279 = vunpack.c.l.b16 %v1215
        %v1280 = vunpack.c.l.b16 %v1216
        %v1281 = vunpack.c.l.b16 %v1217
        %v1282 = vunpack.c.l.b16 %v1218
        %v1283 = vunpack.c.l.b16 %v1219
        %v1284 = vunpack.c.l.b16 %v1220
        %v1285 = vunpack.c.l.b16 %v1221
        %v1286 = vunpack.c.l.b16 %v1222
        %v1287 = vunpack.c.l.b16 %v1223
        %v1288 = vunpack.c.l.b16 %v1224
        %v1289 = vunpack.c.l.b16 %v1225
        %v1290 = vunpack.c.l.b16 %v1226
        %v1291 = vunpack.c.l.b16 %v1227
        %v1292 = vunpack.c.l.b16 %v1228
        %v1293 = vunpack.c.l.b16 %v1229
        %v1294 = vunpack.c.l.b16 %v1230
        %v1295 = vunpack.c.l.b16 %v1231
        %v1296 = vunpack.c.l.b16 %v1232
        %v1297 = vunpack.c.l.b16 %v1233
        %v1298 = vunpack.c.l.b16 %v1234
        %v1299 = vpack.c.b16 %v1268, %v1267
        %v1300 = vpack.c.b16 %v1270, %v1269
        %v1301 = vpack.c.b16 %v1272, %v1271
        %v1302 = vpack.c.b16 %v1274, %v1273
        %v1303 = vpack.c.b16 %v1276, %v1275
        %v1304 = vpack.c.b16 %v1278, %v1277
        %v1305 = vpack.c.b16 %v1280, %v1279
        %v1306 = vpack.c.b16 %v1282, %v1281
        %v1307 = vpack.c.b16 %v1284, %v1283
        %v1308 = vpack.c.b16 %v1286, %v1285
        %v1309 = vpack.c.b16 %v1288, %v1287
        %v1310 = vpack.c.b16 %v1290, %v1289
        %v1311 = vpack.c.b16 %v1292, %v1291
        %v1312 = vpack.c.b16 %v1294, %v1293
        %v1313 = vpack.c.b16 %v1296, %v1295
        %v1314 = vpack.c.b16 %v1298, %v1297
        %1331 = vmatpush.bf16.msra.mxu0 %v1306
        %1332 = vmatpush.bf16.msra.mxu0 %v1305
        %1333 = vmatpush.bf16.msra.mxu0 %v1304
        %1334 = vmatpush.bf16.msra.mxu0 %v1303
        %1335 = vmatpush.bf16.msra.mxu0 %v1302
        %1336 = vmatpush.bf16.msra.mxu0 %v1301
        %1337 = vmatpush.bf16.msra.mxu0 %v1300
        %1338 = vmatpush.bf16.msra.mxu0 %v1299
        %1339 = vmatmul.bf16.gmra.mxu0 %v417
        %v1340 = vpop.f32.mrf.mxu0
        %v1341 = vadd.f32 %v409, %v1340
        %v1342 = vpop.f32.mrf.mxu0
        %v1343 = vadd.f32 %v409, %v1342
        %1344 = vdwg.mxu0
        %1345 = vmatpush.bf16.msra.mxu0 %v1314
        %1346 = vmatpush.bf16.msra.mxu0 %v1313
        %1347 = vmatpush.bf16.msra.mxu0 %v1312
        %1348 = vmatpush.bf16.msra.mxu0 %v1311
        %1349 = vmatpush.bf16.msra.mxu0 %v1310
        %1350 = vmatpush.bf16.msra.mxu0 %v1309
        %1351 = vmatpush.bf16.msra.mxu0 %v1308
        %1352 = vmatpush.bf16.msra.mxu0 %v1307
        %1353 = vmatmul.bf16.gmra.mxu0 %v418
        %v1354 = vpop.f32.mrf.mxu0
        %v1355 = vadd.f32 %v1341, %v1354
        %v1356 = vpop.f32.mrf.mxu0
        %v1357 = vadd.f32 %v1343, %v1356
        %1358 = vdwg.mxu0
        %v1359 = vmul.f32 %v1355, 0.5
        %v1360 = vmul.f32 %v1357, 0.5
        %v1361 = vmul.f32 %v1355, 0.70710677
        %v1362 = vmul.f32 %v1357, 0.70710677
        %v1363 = vand.u32 2147483647, %v1361
        %v1364 = vand.u32 2147483647, %v1362
        %v1365 = vmul.f32 %v1363, 0.3275911
        %v1366 = vmul.f32 %v1364, 0.3275911
        %v1367 = vadd.f32 %v1365, 1.0
        %v1368 = vadd.f32 %v1366, 1.0
        %v1369 = vrcp.pop %v1367
        %v1370 = vmul.f32 %v1367, %v1369
        %v1371 = vsub.f32 1.0, %v1370
        %v1372 = vmul.f32 %v1369, %v1371
        %v1373 = vadd.f32 %v1369, %v1372
        %vm1374 = vweird.f32 %v1367
        %vm1375 = vweird.f32 %v1369
        %vm1376 = vmor %vm1374, %vm1375
        %v1377 = vsel %vm1376, %v1369, %v1373
        %v1378 = vand.u32 2147483647, %v1367
        %vm1379 = vcmp.eq.f32.partialorder %v1378, 8.507059e+37
        %v1380 = vand.u32 %v1367, 2147483648
        %v1381 = vor.u32 1.1754944e-38, %v1380
        %v1382 = vsel %vm1379, %v1381, %v1377
        %v1383 = vmul.f32 1.0, %v1382
        %v1384 = vrcp.pop %v1368
        %v1385 = vmul.f32 %v1368, %v1384
        %v1386 = vsub.f32 1.0, %v1385
        %v1387 = vmul.f32 %v1384, %v1386
        %v1388 = vadd.f32 %v1384, %v1387
        %vm1389 = vweird.f32 %v1368
        %vm1390 = vweird.f32 %v1384
        %vm1391 = vmor %vm1389, %vm1390
        %v1392 = vsel %vm1391, %v1384, %v1388
        %v1393 = vand.u32 2147483647, %v1368
        %vm1394 = vcmp.eq.f32.partialorder %v1393, 8.507059e+37
        %v1395 = vand.u32 %v1368, 2147483648
        %v1396 = vor.u32 1.1754944e-38, %v1395
        %v1397 = vsel %vm1394, %v1396, %v1392
        %v1398 = vmul.f32 1.0, %v1397
        %v1399 = vmul.f32 %v1383, 1.0614054
        %v1400 = vmul.f32 %v1398, 1.0614054
        %v1401 = vadd.f32 %v1399, -1.4531521
        %v1402 = vadd.f32 %v1400, -1.4531521
        %v1403 = vmul.f32 %v1401, %v1383
        %v1404 = vmul.f32 %v1402, %v1398
        %v1405 = vadd.f32 %v1403, 1.4214138
        %v1406 = vadd.f32 %v1404, 1.4214138
        %v1407 = vmul.f32 %v1405, %v1383
        %v1408 = vmul.f32 %v1406, %v1398
        %v1409 = vadd.f32 %v1407, -0.28449672
        %v1410 = vadd.f32 %v1408, -0.28449672
        %v1411 = vmul.f32 %v1409, %v1383
        %v1412 = vmul.f32 %v1410, %v1398
        %v1413 = vadd.f32 %v1411, 0.2548296
        %v1414 = vadd.f32 %v1412, 0.2548296
        %v1415 = vmul.f32 %v1413, %v1383
        %v1416 = vmul.f32 %v1414, %v1398
        %v1417 = vsub.f32 0.0, %v1363
        %v1418 = vsub.f32 0.0, %v1364
        %v1419 = vmul.f32 %v1417, %v1363
        %v1420 = vmul.f32 %v1418, %v1364
        %v1421 = vmul.f32 %v1419, 1.442695
        %v1422 = vpow.pop %v1421
        %v1423 = vmul.f32 %v1420, 1.442695
        %v1424 = vpow.pop %v1423
        %v1425 = vmul.f32 %v1415, %v1422
        %v1426 = vmul.f32 %v1416, %v1424
        %v1427 = vsub.f32 1.0, %v1425
        %v1428 = vsub.f32 1.0, %v1426
        %vm1429 = vcmp.ge.f32.partialorder %v1361, 0.0
        %vm1430 = vcmp.ge.f32.partialorder %v1362, 0.0
        %v1431 = vsub.f32 0.0, %v1427
        %v1432 = vsub.f32 0.0, %v1428
        %v1433 = vsel %vm1429, %v1427, %v1431
        %v1434 = vsel %vm1430, %v1428, %v1432
        %v1435 = vadd.f32 %v1433, 1.0
        %v1436 = vadd.f32 %v1434, 1.0
        %v1437 = vmul.f32 %v1359, %v1435
        %v1438 = vmul.f32 %v1360, %v1436
        %v1439 = vpack.c.bf16 %v1437, %v1437
        %v1440 = vpack.c.bf16 %v1438, %v1438
        %v1442 = vshrl.u32 %v1439, 16
        %v1444 = vrot.slane %v1442, 5
        %v1445 = vshll.u32 %v1439, 16
        %v1447 = vrot.slane %v1445, 6
        %v1448 = vor.u32 %v1444, %v1447
        %vm1450 = vcmask 125954
        %vm1451 = vmand %vm1450, %vm897
        %v1452 = vld [vmem:[#allocation3] sm:$0xc]
        %v1453 = vsel %vm1451, %v1448, %v1452
        %1454 = vst [vmem:[#allocation3] sm:$0xc] %v1453
        %v1455 = vrot.slane %v1448, 4
        %vm1457 = vcmask 123904
        %vm1458 = vmand %vm1457, %vm891
        %v1459 = vld [vmem:[#allocation3 + $0x8] sm:$0x3]
        %v1460 = vsel %vm1458, %v1455, %v1459
        %1461 = vst [vmem:[#allocation3 + $0x8] sm:$0x3] %v1460
        %v1463 = vshrl.u32 %v1440, 16
        %v1465 = vrot.slane %v1463, 5
        %v1466 = vshll.u32 %v1440, 16
        %v1468 = vrot.slane %v1466, 6
        %v1469 = vor.u32 %v1465, %v1468
        %v1471 = vld [vmem:[#allocation3 + $0x8] sm:$0xc]
        %v1472 = vsel %vm1451, %v1469, %v1471
        %1473 = vst [vmem:[#allocation3 + $0x8] sm:$0xc] %v1472
        %v1475 = vrot.slane %v1439, 6
        %1476 = vrot.lane.b32.xlu0 %v1475, 32
        %v1477 = vpop.permute.xlu0 %1476
        %vm1479 = vcmask 388354
        %1480 = vst.msk [vmem:[#allocation3] sm:$0xc] %vm1479, %v1477
        %v1481 = vrot.slane %v1475, 4
        %1482 = vrot.lane.b32.xlu0 %v1481, 32
        %v1483 = vpop.permute.xlu0 %1482
        %vm1485 = vcmask 386304
        %1486 = vst.msk [vmem:[#allocation3 + $0x8] sm:$0x3] %vm1485, %v1483
        %v1488 = vrot.slane %v1440, 6
        %1489 = vrot.lane.b32.xlu0 %v1488, 32
        %v1490 = vpop.permute.xlu0 %1489
        %1492 = vst.msk [vmem:[#allocation3 + $0x8] sm:$0xc] %vm1479, %v1490
        %v1493 = vrot.slane %v1442, 7
        %v1494 = vor.u32 %v1493, %v1445
        %1495 = vrot.lane.b32.xlu0 %v1494, 96
        %v1496 = vpop.permute.xlu0 %1495
        %vm1498 = vcmask 911104
        %vm1499 = vmand %vm1498, %vm891
        %v1500 = vld [vmem:[#allocation3] sm:$0x3]
        %v1501 = vsel %vm1499, %v1496, %v1500
        %1502 = vst [vmem:[#allocation3] sm:$0x3] %v1501
        %vm1503 = vcmask 913154
        %vm1504 = vmand %vm1503, %vm897
        %v1505 = vld [vmem:[#allocation3] sm:$0xc]
        %v1506 = vsel %vm1504, %v1496, %v1505
        %1507 = vst [vmem:[#allocation3] sm:$0xc] %v1506
        %v1508 = vrot.slane %v1463, 7
        %v1509 = vor.u32 %v1508, %v1466
        %1510 = vrot.lane.b32.xlu0 %v1509, 96
        %v1511 = vpop.permute.xlu0 %1510
        %v1513 = vld [vmem:[#allocation3 + $0x8] sm:$0x3]
        %v1514 = vsel %vm1499, %v1511, %v1513
        %1515 = vst [vmem:[#allocation3 + $0x8] sm:$0x3] %v1514
        %v1516 = vld [vmem:[#allocation3 + $0x8] sm:$0xc]
        %v1517 = vsel %vm1504, %v1511, %v1516
        %1518 = vst [vmem:[#allocation3 + $0x8] sm:$0xc] %v1517
        %vm1519 = vcmask 123904
        %1520 = vst.msk [vmem:[#allocation3 + $0x4] sm:$0x3] %vm1519, %v1439
        %vm1521 = vcmask 125954
        %1522 = vst.msk [vmem:[#allocation3 + $0x4] sm:$0xc] %vm1521, %v1439
        %1523 = vst.msk [vmem:[#allocation3 + $0xc] sm:$0x3] %vm1519, %v1440
        %1524 = vst.msk [vmem:[#allocation3 + $0xc] sm:$0xc] %vm1521, %v1440
        %v1525 = vld [vmem:[#allocation3] sm:$0xff]
        %v1526 = vld [vmem:[#allocation3 + $0x8] sm:$0xff]
        %v1527 = vld [vmem:[%s3] sm:$0xf]
        %v1528 = vld [vmem:[%s3 + $0x4] sm:$0xf]
        %v1529 = vld [vmem:[%s3 + $0x8] sm:$0xf]
        %v1530 = vld [vmem:[%s3 + $0xc] sm:$0xf]
        %v1531 = vld [vmem:[%s3 + $0x10] sm:$0xf]
        %v1532 = vld [vmem:[%s3 + $0x14] sm:$0xf]
        %v1533 = vld [vmem:[%s3 + $0x18] sm:$0xf]
        %v1534 = vld [vmem:[%s3 + $0x1c] sm:$0xf]
        %v1535 = vld [vmem:[%s3 + $0x20] sm:$0xf]
        %v1536 = vld [vmem:[%s3 + $0x24] sm:$0xf]
        %v1537 = vld [vmem:[%s3 + $0x28] sm:$0xf]
        %v1538 = vld [vmem:[%s3 + $0x2c] sm:$0xf]
        %v1539 = vld [vmem:[%s3 + $0x30] sm:$0xf]
        %v1540 = vld [vmem:[%s3 + $0x34] sm:$0xf]
        %v1541 = vld [vmem:[%s3 + $0x38] sm:$0xf]
        %v1542 = vld [vmem:[%s3 + $0x3c] sm:$0xf]
        %v1543 = vld [vmem:[%s3 + $0x40] sm:$0xf]
        %v1544 = vld [vmem:[%s3 + $0x44] sm:$0xf]
        %v1545 = vld [vmem:[%s4] sm:$0x1]
        %v1547 = vperm.slane %v1545, 0
        %v1551 = vunpack.c.l.b16 %v1525
        %v1552 = vunpack.c.h.b16 %v1525
        %v1553 = vunpack.c.l.b16 %v1526
        %v1554 = vunpack.c.h.b16 %v1526
        %v1555 = vpack.c.b16 %v1553, %v1551
        %v1556 = vpack.c.b16 %v1554, %v1552
        %v1576 = vunpack.c.l.b16 %v1527
        %v1577 = vunpack.c.l.b16 %v1528
        %v1578 = vunpack.c.l.b16 %v1529
        %v1579 = vunpack.c.l.b16 %v1530
        %v1580 = vunpack.c.l.b16 %v1531
        %v1581 = vunpack.c.l.b16 %v1532
        %v1582 = vunpack.c.l.b16 %v1533
        %v1583 = vunpack.c.l.b16 %v1534
        %v1584 = vunpack.c.l.b16 %v1535
        %v1585 = vunpack.c.l.b16 %v1536
        %v1586 = vunpack.c.l.b16 %v1537
        %v1587 = vunpack.c.l.b16 %v1538
        %v1588 = vunpack.c.l.b16 %v1539
        %v1589 = vunpack.c.l.b16 %v1540
        %v1590 = vunpack.c.l.b16 %v1541
        %v1591 = vunpack.c.l.b16 %v1542
        %v1592 = vunpack.c.l.b16 %v1543
        %v1593 = vunpack.c.l.b16 %v1544
        %v1594 = vpack.c.b16 %v1577, %v1576
        %v1595 = vpack.c.b16 %v1579, %v1578
        %v1596 = vpack.c.b16 %v1581, %v1580
        %v1597 = vpack.c.b16 %v1583, %v1582
        %v1598 = vpack.c.b16 %v1585, %v1584
        %v1599 = vpack.c.b16 %v1587, %v1586
        %v1600 = vpack.c.b16 %v1589, %v1588
        %v1601 = vpack.c.b16 %v1591, %v1590
        %v1602 = vpack.c.b16 %v1593, %v1592
        %vm1612 = vcmask 130048
        %v1614 = vsel %vm1612, %v1556, 0
        %1616 = vmatpush.bf16.msra.mxu0 %v1601
        %1617 = vmatpush.bf16.msra.mxu0 %v1600
        %1618 = vmatpush.bf16.msra.mxu0 %v1599
        %1619 = vmatpush.bf16.msra.mxu0 %v1598
        %1620 = vmatpush.bf16.msra.mxu0 %v1597
        %1621 = vmatpush.bf16.msra.mxu0 %v1596
        %1622 = vmatpush.bf16.msra.mxu0 %v1595
        %1623 = vmatpush.bf16.msra.mxu0 %v1594
        %1624 = vmatmul.bf16.gmra.mxu0 %v1555
        %v1625 = vpop.f32.mrf.mxu0
        %v1626 = vadd.f32 %v1547, %v1625
        %v1627 = vpop.f32.mrf.mxu0
        %v1628 = vadd.f32 %v1547, %v1627
        %1629 = vdwg.mxu0
        %1630 = vmatpush.bf16.msra.mxu0 0
        %1631 = vmatpush.bf16.msra.mxu0 0
        %1632 = vmatpush.bf16.msra.mxu0 0
        %1633 = vmatpush.bf16.msra.mxu0 0
        %1634 = vmatpush.bf16.msra.mxu0 0
        %1635 = vmatpush.bf16.msra.mxu0 0
        %1636 = vmatpush.bf16.msra.mxu0 0
        %1637 = vmatpush.bf16.msra.mxu0 %v1602
        %1638 = vmatmul.bf16.gmra.mxu0 %v1614
        %v1639 = vpop.f32.mrf.mxu0
        %v1640 = vadd.f32 %v1626, %v1639
        %v1641 = vpop.f32.mrf.mxu0
        %v1642 = vadd.f32 %v1628, %v1641
        %1643 = vdwg.mxu0
        %v1644 = vxor.u32 %v1640, 2147483648
        %v1645 = vxor.u32 %v1642, 2147483648
        %v1646 = vmul.f32 %v1644, 1.442695
        %v1647 = vpow.pop %v1646
        %v1648 = vmul.f32 %v1645, 1.442695
        %v1649 = vpow.pop %v1648
        %v1650 = vadd.f32 %v1647, 1.0
        %v1651 = vadd.f32 %v1649, 1.0
        %v1652 = vrcp.pop %v1650
        %v1653 = vmul.f32 %v1650, %v1652
        %v1654 = vsub.f32 1.0, %v1653
        %v1655 = vmul.f32 %v1652, %v1654
        %v1656 = vadd.f32 %v1652, %v1655
        %vm1657 = vweird.f32 %v1650
        %vm1658 = vweird.f32 %v1652
        %vm1659 = vmor %vm1657, %vm1658
        %v1660 = vsel %vm1659, %v1652, %v1656
        %v1661 = vand.u32 2147483647, %v1650
        %vm1662 = vcmp.eq.f32.partialorder %v1661, 8.507059e+37
        %v1663 = vand.u32 %v1650, 2147483648
        %v1664 = vor.u32 1.1754944e-38, %v1663
        %v1665 = vsel %vm1662, %v1664, %v1660
        %v1666 = vmul.f32 1.0, %v1665
        %v1667 = vrcp.pop %v1651
        %v1668 = vmul.f32 %v1651, %v1667
        %v1669 = vsub.f32 1.0, %v1668
        %v1670 = vmul.f32 %v1667, %v1669
        %v1671 = vadd.f32 %v1667, %v1670
        %vm1672 = vweird.f32 %v1651
        %vm1673 = vweird.f32 %v1667
        %vm1674 = vmor %vm1672, %vm1673
        %v1675 = vsel %vm1674, %v1667, %v1671
        %v1676 = vand.u32 2147483647, %v1651
        %vm1677 = vcmp.eq.f32.partialorder %v1676, 8.507059e+37
        %v1678 = vand.u32 %v1651, 2147483648
        %v1679 = vor.u32 1.1754944e-38, %v1678
        %v1680 = vsel %vm1677, %v1679, %v1675
        %v1681 = vmul.f32 1.0, %v1680
        %v1682 = vmul.f32 %v1640, %v1666
        %v1683 = vmul.f32 %v1642, %v1681
        %vm1684 = vcmask 261120
        %1685 = vst.msk [vmem:[%s217] sm:$0xff] %vm1684, %v1682
        %1686 = vst.msk [vmem:[%s217 + $0x8] sm:$0xff] %vm1684, %v1683
        %s1687 = sand.u32 %s137, 1
        %s1688 = scalar_lea.sflag [#allocation5], %s1687
        %s1689 = sand.u32 %s137, 1
        %s1690 = smul.addr %s1689, 16
        %s1691 = scalar_lea.vmem [#allocation4], %s1690
        // Predicated region
        $region41: #{simple_stem_forward.1} parent=39 // pred_check
          %p1692 = pneg %p147
        $region42: #{simple_stem_forward.1} parent=39 // pred_check_branch
          %1694 = sbr.rel (%p1692) target = $region44
        $region43: #{simple_stem_forward.1} parent=39 // pred_region
          %1696 = vsyncadd %s1688, 0
          %s1697 = smul.addr %s19, 2
          %s1698 = smul.addr %s1697, 8
          %s1699 = scalar_lea.hbm %s5, %s1698
          %s1700 = sshll.u32 %s1691, 4
          %s1701 = int_to_ptr.vmem [resolvable:$true] %s1700
          %s1702 = sshll.u32 %s1699, 4
          %s1703 = int_to_ptr.hbm [resolvable:$true] %s1702
          %1708 = dma.vmem_to_hbm [thread:$0]  %s1701, 256, %s1703, %s1688, 128, 128, 8
        $region44: #{simple_stem_forward.1} parent=39 // pred_fallthru
          _
      $region40: #{simple_stem_forward.1} parent=5 // pred_fallthru
        _
      %p1709 = scmp.le.s32.totalorder 2, %s14
      // Predicated region
      $region45: #{simple_stem_forward.1} parent=5 // pred_check
        %p1710 = pneg %p1709
      $region46: #{simple_stem_forward.1} parent=5 // pred_check_branch
        %1712 = sbr.rel (%p1710) target = $region48
      $region47: #{simple_stem_forward.1} parent=5 // pred_region
        %s1713 = ssub.s32 %s14, 2
        // Predicated region
        $region49: #{simple_stem_forward.1} parent=47 // pred_check
          %p1714 = pneg %p153
        $region50: #{simple_stem_forward.1} parent=47 // pred_check_branch
          %1716 = sbr.rel (%p1714) target = $region52
        $region51: #{simple_stem_forward.1} parent=47 // pred_region
          %s1717 = sand.u32 %s138, 1
          %s1718 = scalar_lea.sflag [#allocation5], %s1717
          %s1719 = sand.u32 %s138, 1
          %s1720 = smul.addr %s1719, 16
          %s1721 = scalar_lea.vmem [#allocation4], %s1720
          %1723 = dma.done %s1718, 256
        $region52: #{simple_stem_forward.1} parent=47 // pred_fallthru
          _
      $region48: #{simple_stem_forward.1} parent=5 // pred_fallthru
        _
    $region6: #{simple_stem_forward.1} parent=1 // loop_footer
      %s18 = sadd.s32 1, %s14
    $region7: #{simple_stem_forward.1} parent=1 // loop_footer_branch
      %13 = sbr.rel target = $region3
    $region8: #{simple_stem_forward.1} parent=1 // loop_exit
      _
    %1724 = vsyncpa [#allocation5], 1
    %s1725 = scalar_lea.sflag [#allocation5], 1
    %1726 = vsyncpa %s1725, 1

</llo_original>
